<compile_context>
chip_gen: v7x
topology: tpu7x:2x2x1
jax: 0.10.0
libtpu: 0.0.40
codegen_flags: <defaults>
</compile_context>

<pallas_src>
import functools

import numpy as np
import jax
import jax.numpy as jnp
from jax.experimental import pallas as pl
from jax.experimental.pallas import tpu as pltpu


# ----------------------------------------------------------------------------
# Small helpers
# ----------------------------------------------------------------------------
def _nbytes(*arrs):
    total = 0
    for a in arrs:
        total += int(np.prod(a.shape)) * jnp.dtype(a.dtype).itemsize
    return total


def _vmem_limit(resident_bytes, temp_bytes=0):
    est = 2 * resident_bytes + temp_bytes + (1 << 20)
    return int(min(max(est, 4 << 20), 64 << 20))


# ----------------------------------------------------------------------------
# Kernel 1: full GNN stack — grid=(num_layers,), h carried in VMEM scratch
# ----------------------------------------------------------------------------
def _gnn_stack_kernel(h0_ref, src_ref, dst_ref,
                      wm_ref, bm_ref, wr_ref, br_ref,
                      wih_ref, bih_ref, whh_ref, bhh_ref,
                      hout_ref, h_carry):
    f32 = jnp.float32
    layer = pl.program_id(0)

    @pl.when(layer == 0)
    def _():
        h_carry[...] = h0_ref[...].astype(f32)

    h = h_carry[...]                                               # (N, D)
    N, D = h.shape
    E = src_ref.shape[0]

    # One-hot selection masks built in-kernel (never touch HBM); 0/1 exact.
    node_ids = jax.lax.broadcasted_iota(jnp.int32, (E, N), 1)
    sel_src = (node_ids == src_ref[...]).astype(f32)               # (E, N)
    sel_dst = (node_ids == dst_ref[...]).astype(f32)               # (E, N)

    # Edge gathers on the MXU.
    h_src = jnp.dot(sel_src, h, preferred_element_type=f32)        # (E, D)
    h_dst = jnp.dot(sel_dst, h, preferred_element_type=f32)        # (E, D)

    # Message MLPs; the [h_j, h_i] concat lives in-register.
    a_fwd = jnp.dot(jnp.concatenate([h_src, h_dst], axis=1), wm_ref[0],
                    preferred_element_type=f32) + bm_ref[0]        # (E, 2D)
    a_rev = jnp.dot(jnp.concatenate([h_dst, h_src], axis=1), wr_ref[0],
                    preferred_element_type=f32) + br_ref[0]        # (E, 2D)

    # 'add' aggregation: contract over the edge axis (forward -> dst targets,
    # reversed -> src targets).
    ct = (((0,), (0,)), ((), ()))
    aggr = (jax.lax.dot_general(sel_dst, a_fwd, ct, preferred_element_type=f32)
            + jax.lax.dot_general(sel_src, a_rev, ct,
                                  preferred_element_type=f32))     # (N, 2D)

    # GRUCell(aggr, h): full-width packed matmuls, static lane slices.
    gi = jnp.dot(aggr, wih_ref[0], preferred_element_type=f32) + bih_ref[0]
    gh = jnp.dot(h, whh_ref[0], preferred_element_type=f32) + bhh_ref[0]
    r = jax.nn.sigmoid(gi[:, :D] + gh[:, :D])
    z = jax.nn.sigmoid(gi[:, D:2 * D] + gh[:, D:2 * D])
    n = jnp.tanh(gi[:, 2 * D:] + r * gh[:, 2 * D:])
    h_new = (1.0 - z) * n + z * h

    h_carry[...] = h_new

    @pl.when(layer == pl.num_programs(0) - 1)
    def _():
        hout_ref[...] = h_new.astype(hout_ref.dtype)


def _gnn_stack(h_flat, edge_index, gp):
    N, D = h_flat.shape
    E = edge_index.shape[1]
    L = gp["wm"].shape[0]
    src = edge_index[0].reshape(E, 1).astype(jnp.int32)
    dst = edge_index[1].reshape(E, 1).astype(jnp.int32)

    args = [h_flat, src, dst, gp["wm"], gp["bm"], gp["wr"], gp["br"],
            gp["wih"], gp["bih"], gp["whh"], gp["bhh"]]
    in_specs = [
        pl.BlockSpec((N, D), lambda l: (0, 0)),
        pl.BlockSpec((E, 1), lambda l: (0, 0)),
        pl.BlockSpec((E, 1), lambda l: (0, 0)),
        pl.BlockSpec((1, 2 * D, 2 * D), lambda l: (l, 0, 0)),
        pl.BlockSpec((1, 1, 2 * D), lambda l: (l, 0, 0)),
        pl.BlockSpec((1, 2 * D, 2 * D), lambda l: (l, 0, 0)),
        pl.BlockSpec((1, 1, 2 * D), lambda l: (l, 0, 0)),
        pl.BlockSpec((1, 2 * D, 3 * D), lambda l: (l, 0, 0)),
        pl.BlockSpec((1, 1, 3 * D), lambda l: (l, 0, 0)),
        pl.BlockSpec((1, D, 3 * D), lambda l: (l, 0, 0)),
        pl.BlockSpec((1, 1, 3 * D), lambda l: (l, 0, 0)),
    ]

    flops_layer = (4 * E * N * D          # gathers
                   + 16 * E * D * D       # message linears
                   + 8 * E * N * D        # scatter-add contractions
                   + 18 * N * D * D)      # GRU matmuls
    args_bytes = _nbytes(*args)
    out_bytes = N * D * 4
    temps = 2 * E * N * 4 + 8 * E * D * 4 + 2 * N * D * 4 + 6 * N * D * 4
    cost = pl.CostEstimate(flops=L * flops_layer,
                           transcendentals=L * 3 * N * D,
                           bytes_accessed=args_bytes + out_bytes)

    return pl.pallas_call(
        _gnn_stack_kernel,
        out_shape=jax.ShapeDtypeStruct((N, D), jnp.float32),
        grid=(L,),
        in_specs=in_specs,
        out_specs=pl.BlockSpec((N, D), lambda l: (0, 0)),
        scratch_shapes=[pltpu.VMEM((N, D), jnp.float32)],
        compiler_params=pltpu.CompilerParams(
            dimension_semantics=("arbitrary",),
            vmem_limit_bytes=_vmem_limit(args_bytes + 2 * out_bytes, temps)),
        cost_estimate=cost,
    )(*args)


# ----------------------------------------------------------------------------
# Kernel 2: node normalize + both GraphAggr heads, grid over graphs (parallel)
# ----------------------------------------------------------------------------
def _tail_kernel(h_ref, wf_ref, bf_ref, wg_ref, bg_ref, ho_ref, hg_ref,
                 *, use_gate, normalize_h, inv_idx, sp):
    f32 = jnp.float32
    h = h_ref[0].astype(f32)                                       # (idx, D)
    if normalize_h:                                                # static flag
        h = h * jax.lax.rsqrt(
            jnp.maximum(jnp.sum(h * h, axis=-1, keepdims=True), 1e-24))
    ho_ref[0] = h.astype(ho_ref.dtype)

    # Both heads' f-projections in one lane-dense (D, 2*SP) matmul.
    hv = jnp.dot(h, wf_ref[...], preferred_element_type=f32) + bf_ref[...]
    if use_gate:
        gates = jax.nn.sigmoid(
            jnp.dot(h, wg_ref[...], preferred_element_type=f32) + bg_ref[...])

    def head(hv_half, gate_col):
        if use_gate:
            pooled = jnp.sum(hv_half * gate_col, axis=0, keepdims=True)
        else:
            pooled = jnp.sum(hv_half, axis=0, keepdims=True) * inv_idx
        return pooled * jax.lax.rsqrt(
            jnp.maximum(jnp.sum(pooled * pooled, axis=-1, keepdims=True),
                        1e-24))

    out1 = head(hv[:, :sp], gates[:, 0:1] if use_gate else None)
    out2 = head(hv[:, sp:], gates[:, 1:2] if use_gate else None)
    hg_ref[0] = jnp.concatenate([out1, out2], axis=1).astype(hg_ref.dtype)


def _graph_embed_tail(h3, tail, *, use_gate, normalize_h, inv_idx):
    Bg, idx, D = h3.shape
    SP = tail["sp"]
    args = [h3, tail["wf"], tail["bf"], tail["wg"], tail["bg"]]
    in_specs = [
        pl.BlockSpec((1, idx, D), lambda b: (b, 0, 0)),
        pl.BlockSpec(tail["wf"].shape, lambda b: (0, 0)),
        pl.BlockSpec(tail["bf"].shape, lambda b: (0, 0)),
        pl.BlockSpec(tail["wg"].shape, lambda b: (0, 0)),
        pl.BlockSpec(tail["bg"].shape, lambda b: (0, 0)),
    ]
    out_specs = (pl.BlockSpec((1, idx, D), lambda b: (b, 0, 0)),
                 pl.BlockSpec((1, 1, 2 * SP), lambda b: (b, 0, 0)))

    N = Bg * idx
    args_bytes = _nbytes(*args)
    out_bytes = (N * D + Bg * 2 * SP) * 4
    flops = 4 * N * D * SP + 4 * N * D + 8 * N * SP
    cost = pl.CostEstimate(flops=flops, transcendentals=2 * N + 4 * Bg,
                           bytes_accessed=args_bytes + out_bytes)
    kernel = functools.partial(_tail_kernel, use_gate=use_gate,
                               normalize_h=normalize_h, inv_idx=inv_idx, sp=SP)
    h_out, hg = pl.pallas_call(
        kernel,
        out_shape=(jax.ShapeDtypeStruct((Bg, idx, D), jnp.float32),
                   jax.ShapeDtypeStruct((Bg, 1, 2 * SP), jnp.float32)),
        grid=(Bg,),
        in_specs=in_specs,
        out_specs=out_specs,
        compiler_params=pltpu.CompilerParams(
            dimension_semantics=("parallel",),
            vmem_limit_bytes=_vmem_limit(args_bytes + out_bytes,
                                         idx * 2 * SP * 8)),
        cost_estimate=cost,
    )(*args)
    return h_out, hg.reshape(Bg, 2 * SP)


# ----------------------------------------------------------------------------
# One-time weight prepack (transposes / pads / stacking hoisted out of forward)
# ----------------------------------------------------------------------------
def prepack_params(params, ndim, sdim):
    layers = params["layers"]
    gnn = None
    if layers:
        def stack(fn):
            return jnp.stack([fn(lp) for lp in layers])
        gnn = dict(
            wm=stack(lambda lp: lp["msg_w"].T),
            bm=stack(lambda lp: lp["msg_b"].reshape(1, -1)),
            wr=stack(lambda lp: lp["rev_w"].T),
            br=stack(lambda lp: lp["rev_b"].reshape(1, -1)),
            wih=stack(lambda lp: lp["ih_w"].T),
            bih=stack(lambda lp: lp["ih_b"].reshape(1, -1)),
            whh=stack(lambda lp: lp["hh_w"].T),
            bhh=stack(lambda lp: lp["hh_b"].reshape(1, -1)),
        )

    SP = -(-sdim // 128) * 128          # lane-dense padded head width

    def pad_f(p):
        return jnp.pad(p["f_w"].T, ((0, 0), (0, SP - sdim)))       # (D, SP)

    def pad_b(p):
        return jnp.pad(p["f_b"], (0, SP - sdim))

    tail = dict(
        wf=jnp.concatenate([pad_f(params["emb"]), pad_f(params["emb_init"])],
                           axis=1),                                 # (D, 2SP)
        bf=jnp.concatenate([pad_b(params["emb"]),
                            pad_b(params["emb_init"])]).reshape(1, 2 * SP),
        wg=jnp.concatenate([params["emb"]["g_w"].T,
                            params["emb_init"]["g_w"].T], axis=1),  # (D, 2)
        bg=jnp.concatenate([params["emb"]["g_b"],
                            params["emb_init"]["g_b"]]).reshape(1, 2),
        sp=SP, sdim=sdim)
    return dict(gnn=gnn, tail=tail, ndim=ndim)


# ----------------------------------------------------------------------------
# Full GraphEmbed forward
# ----------------------------------------------------------------------------
def graph_embed_forward(h, edge_index, packed, *, aggr="gsum"):
    """h: (B, idx, ndim) float32, edge_index: (2, E) int32 over flat nodes."""
    Bg, idx, D = h.shape
    N = Bg * idx
    h_flat = h.reshape(N, D).astype(jnp.float32)
    has_edges = edge_index.shape[1] > 0

    if has_edges and packed["gnn"] is not None:
        # TODO(synk): F.dropout between layers is a no-op here (eval mode);
        # training-mode dropout would need pltpu.prng_random_bits in-kernel.
        h_flat = _gnn_stack(h_flat, edge_index, packed["gnn"])

    tail = packed["tail"]
    h_out, hg_both = _graph_embed_tail(
        h_flat.reshape(Bg, idx, D), tail,
        use_gate=(aggr == "gsum"), normalize_h=has_edges, inv_idx=1.0 / idx)
    SP, sdim = tail["sp"], tail["sdim"]
    return h_out, hg_both[:, :sdim], hg_both[:, SP:SP + sdim]


# ----------------------------------------------------------------------------
# Parameter init (torch-style layouts: Linear weight is (out, in))
# ----------------------------------------------------------------------------
def _init_linear(key, in_f, out_f):
    k1, k2 = jax.random.split(key)
    lim = 1.0 / float(np.sqrt(in_f))
    w = jax.random.uniform(k1, (out_f, in_f), minval=-lim, maxval=lim,
                           dtype=jnp.float32)
    b = jax.random.uniform(k2, (out_f,), minval=-lim, maxval=lim,
                           dtype=jnp.float32)
    return w, b


def init_params(key, ndim, sdim, num_layers):
    keys = jax.random.split(key, num_layers * 4 + 4)
    ki = 0
    layers = []
    for _ in range(num_layers):
        msg_w, msg_b = _init_linear(keys[ki], 2 * ndim, 2 * ndim); ki += 1
        rev_w, rev_b = _init_linear(keys[ki], 2 * ndim, 2 * ndim); ki += 1
        ih_w, ih_b = _init_linear(keys[ki], 2 * ndim, 3 * ndim); ki += 1
        hh_w, hh_b = _init_linear(keys[ki], ndim, 3 * ndim); ki += 1
        layers.append(dict(msg_w=msg_w, msg_b=msg_b, rev_w=rev_w, rev_b=rev_b,
                           ih_w=ih_w, ih_b=ih_b, hh_w=hh_w, hh_b=hh_b))

    def aggr_params(k1, k2):
        f_w, f_b = _init_linear(k1, ndim, sdim)
        g_w, g_b = _init_linear(k2, ndim, 1)
        return dict(f_w=f_w, f_b=f_b, g_w=g_w, g_b=g_b)

    emb = aggr_params(keys[ki], keys[ki + 1]); ki += 2
    emb_init = aggr_params(keys[ki], keys[ki + 1]); ki += 2
    return dict(layers=layers, emb=emb, emb_init=emb_init)


# ----------------------------------------------------------------------------
# Pure-JAX reference (mirrors the PyTorch module op-for-op)
# ----------------------------------------------------------------------------
def _reference(h, edge_index, params, *, aggr="gsum"):
    Bg, idx, D = h.shape
    N = Bg * idx
    hf = h.reshape(N, D)
    E = edge_index.shape[1]
    if E > 0:
        src, dst = edge_index[0], edge_index[1]
        for lp in params["layers"]:
            h_j = jnp.concatenate([hf[src], hf[dst]], axis=0)
            h_i = jnp.concatenate([hf[dst], hf[src]], axis=0)
            m = jnp.concatenate([h_j, h_i], axis=1)                  # (2E, 2D)
            a = jnp.concatenate(
                [m[:E] @ lp["msg_w"].T + lp["msg_b"],
                 m[E:] @ lp["rev_w"].T + lp["rev_b"]], axis=0)
            targets = jnp.concatenate([dst, src], axis=0)
            aggr_out = jax.ops.segment_sum(a, targets, num_segments=N)
            gi = aggr_out @ lp["ih_w"].T + lp["ih_b"]
            gh = hf @ lp["hh_w"].T + lp["hh_b"]
            i_r, i_z, i_n = jnp.split(gi, 3, axis=1)
            h_r, h_z, h_n = jnp.split(gh, 3, axis=1)
            r = jax.nn.sigmoid(i_r + h_r)
            z = jax.nn.sigmoid(i_z + h_z)
            n = jnp.tanh(i_n + r * h_n)
            hf = (1.0 - z) * n + z * hf
        hf = hf / jnp.maximum(
            jnp.linalg.norm(hf, axis=-1, keepdims=True), 1e-12)

    def graph_aggr(p):
        hv = hf @ p["f_w"].T + p["f_b"]
        if aggr == "gsum":
            g = jax.nn.sigmoid(hf @ p["g_w"].T + p["g_b"])
            s = (hv * g).reshape(Bg, idx, -1).sum(axis=1)
        else:
            s = hv.reshape(Bg, idx, -1).mean(axis=1)
        return s / jnp.maximum(jnp.linalg.norm(s, axis=-1, keepdims=True),
                               1e-12)

    return (hf.reshape(Bg, idx, D), graph_aggr(params["emb"]),
            graph_aggr(params["emb_init"]))


# ----------------------------------------------------------------------------
# Demo / self-test
# ----------------------------------------------------------------------------
if __name__ == "__main__":
    ndim, sdim, num_layers = 16, 32, 2
    batch, idx = 2, 4                      # 2 graphs x 4 nodes = 8 nodes

    key = jax.random.PRNGKey(0)
    kh, kp = jax.random.split(key)
    h = jax.random.normal(kh, (batch, idx, ndim), dtype=jnp.float32)
    params = init_params(kp, ndim, sdim, num_layers)
    packed = prepack_params(params, ndim, sdim)

    # Path edges inside each graph, over flattened node ids.
    edges = [(g * idx + v, g * idx + v + 1)
             for g in range(batch) for v in range(idx - 1)]
    edge_index = jnp.asarray(np.array(edges, dtype=np.int32).T)   # (2, 6)
    empty_edges = jnp.zeros((2, 0), dtype=jnp.int32)

    checks = [("gsum/edges", edge_index, "gsum"),
              ("gsum/no-edges", empty_edges, "gsum"),
              ("mean/edges", edge_index, "mean")]
    for name, ei, mode in checks:
        out = graph_embed_forward(h, ei, packed, aggr=mode)
        out = jax.block_until_ready(out)
        ref = _reference(h, ei, params, aggr=mode)
        for o, r in zip(out, ref):
            assert o.shape == r.shape, (name, o.shape, r.shape)
            assert jnp.allclose(o, r, atol=2e-3, rtol=2e-3), name

    print("KERNEL_OK")
</pallas_src>

<mosaic_0001>
module attributes {stable_mosaic.version = 11 : i64} {
  func.func @_gnn_stack_kernel(%arg0: i32, %arg1: memref<8x16xf32, #tpu.memory_space<vmem>>, %arg2: memref<6x1xi32, #tpu.memory_space<vmem>>, %arg3: memref<6x1xi32, #tpu.memory_space<vmem>>, %arg4: memref<1x32x32xf32, #tpu.memory_space<vmem>>, %arg5: memref<1x1x32xf32, #tpu.memory_space<vmem>>, %arg6: memref<1x32x32xf32, #tpu.memory_space<vmem>>, %arg7: memref<1x1x32xf32, #tpu.memory_space<vmem>>, %arg8: memref<1x32x48xf32, #tpu.memory_space<vmem>>, %arg9: memref<1x1x48xf32, #tpu.memory_space<vmem>>, %arg10: memref<1x16x48xf32, #tpu.memory_space<vmem>>, %arg11: memref<1x1x48xf32, #tpu.memory_space<vmem>>, %arg12: memref<8x16xf32, #tpu.memory_space<vmem>>, %arg13: memref<8x16xf32, #tpu.memory_space<vmem>>) attributes {dimension_semantics = [#tpu.dimension_semantics<arbitrary>], iteration_bounds = array<i64: 2>, scalar_prefetch = 0 : i64, scratch_operands = 1 : i64, tpu.core_type = #tpu.core_type<tc>, window_params = [{pipeline_mode = #tpu.pipeline_mode<synchronous>, transform_indices = @transform_0, window_bounds = array<i64: 8, 16>}, {pipeline_mode = #tpu.pipeline_mode<synchronous>, transform_indices = @transform_1, window_bounds = array<i64: 6, 1>}, {pipeline_mode = #tpu.pipeline_mode<synchronous>, transform_indices = @transform_2, window_bounds = array<i64: 6, 1>}, {transform_indices = @transform_3, window_bounds = array<i64: 1, 32, 32>}, {transform_indices = @transform_4, window_bounds = array<i64: 1, 1, 32>}, {transform_indices = @transform_5, window_bounds = array<i64: 1, 32, 32>}, {transform_indices = @transform_6, window_bounds = array<i64: 1, 1, 32>}, {transform_indices = @transform_7, window_bounds = array<i64: 1, 32, 48>}, {transform_indices = @transform_8, window_bounds = array<i64: 1, 1, 48>}, {transform_indices = @transform_9, window_bounds = array<i64: 1, 16, 48>}, {transform_indices = @transform_10, window_bounds = array<i64: 1, 1, 48>}, {pipeline_mode = #tpu.pipeline_mode<synchronous>, transform_indices = @transform_11, window_bounds = array<i64: 8, 16>}]} {
    %c0_i32 = arith.constant 0 : i32
    %0 = arith.cmpi eq, %arg0, %c0_i32 : i32
    %1 = arith.extui %0 : i1 to i32
    %c0_i32_0 = arith.constant 0 : i32
    %2 = arith.cmpi ne, %1, %c0_i32_0 : i32
    scf.if %2 {
      %c0_43 = arith.constant 0 : index
      %c0_44 = arith.constant 0 : index
      %80 = vector.load %arg1[%c0_43, %c0_44] : memref<8x16xf32, #tpu.memory_space<vmem>>, vector<8x16xf32>
      %c0_45 = arith.constant 0 : index
      %c0_46 = arith.constant 0 : index
      %81 = vector.load %arg13[%c0_45, %c0_46] : memref<8x16xf32, #tpu.memory_space<vmem>>, vector<8x16xf32>
      tpu.vector_store %arg13[%c0_45, %c0_46], %80 {strides = array<i32>} : memref<8x16xf32, #tpu.memory_space<vmem>>, vector<8x16xf32>,
    } else {
    }
    %c0 = arith.constant 0 : index
    %c0_1 = arith.constant 0 : index
    %3 = vector.load %arg13[%c0, %c0_1] : memref<8x16xf32, #tpu.memory_space<vmem>>, vector<8x16xf32>
    %4 = tpu.iota {dimensions = array<i32: 1>} : vector<6x8xi32>
    %c0_2 = arith.constant 0 : index
    %c0_3 = arith.constant 0 : index
    %5 = vector.load %arg2[%c0_2, %c0_3] : memref<6x1xi32, #tpu.memory_space<vmem>>, vector<6x1xi32>
    %6 = vector.broadcast %5 : vector<6x1xi32> to vector<6x8xi32>
    %7 = arith.cmpi eq, %4, %6 : vector<6x8xi32>
    %8 = arith.extui %7 : vector<6x8xi1> to vector<6x8xi32>
    %9 = arith.sitofp %8 : vector<6x8xi32> to vector<6x8xf32>
    %c0_4 = arith.constant 0 : index
    %c0_5 = arith.constant 0 : index
    %10 = vector.load %arg3[%c0_4, %c0_5] : memref<6x1xi32, #tpu.memory_space<vmem>>, vector<6x1xi32>
    %11 = vector.broadcast %10 : vector<6x1xi32> to vector<6x8xi32>
    %12 = arith.cmpi eq, %4, %11 : vector<6x8xi32>
    %13 = arith.extui %12 : vector<6x8xi1> to vector<6x8xi32>
    %14 = arith.sitofp %13 : vector<6x8xi32> to vector<6x8xf32>
    %cst = arith.constant dense<0.000000e+00> : vector<6x16xf32>
    %15 = tpu.matmul %9, %3, %cst {dimension_numbers = #tpu.dot_dimension_numbers<[1], [0], [0], [1], [0, 0, 1, 1], [], []>} : vector<6x8xf32>, vector<8x16xf32>, vector<6x16xf32> -> vector<6x16xf32>
    %cst_6 = arith.constant dense<0.000000e+00> : vector<6x16xf32>
    %16 = tpu.matmul %14, %3, %cst_6 {dimension_numbers = #tpu.dot_dimension_numbers<[1], [0], [0], [1], [0, 0, 1, 1], [], []>} : vector<6x8xf32>, vector<8x16xf32>, vector<6x16xf32> -> vector<6x16xf32>
    %17 = tpu.concatenate %15, %16 in 1 : vector<6x16xf32>, vector<6x16xf32> -> vector<6x32xf32>
    %c0_7 = arith.constant 0 : index
    %c0_8 = arith.constant 0 : index
    %c0_9 = arith.constant 0 : index
    %18 = vector.load %arg4[%c0_7, %c0_8, %c0_9] : memref<1x32x32xf32, #tpu.memory_space<vmem>>, vector<1x32x32xf32>
    %19 = vector.shape_cast %18 : vector<1x32x32xf32> to vector<32x32xf32>
    %cst_10 = arith.constant dense<0.000000e+00> : vector<6x32xf32>
    %20 = tpu.matmul %17, %19, %cst_10 {dimension_numbers = #tpu.dot_dimension_numbers<[1], [0], [0], [1], [0, 0, 1, 1], [], []>} : vector<6x32xf32>, vector<32x32xf32>, vector<6x32xf32> -> vector<6x32xf32>
    %c0_11 = arith.constant 0 : index
    %c0_12 = arith.constant 0 : index
    %c0_13 = arith.constant 0 : index
    %21 = vector.load %arg5[%c0_11, %c0_12, %c0_13] : memref<1x1x32xf32, #tpu.memory_space<vmem>>, vector<1x1x32xf32>
    %22 = vector.shape_cast %21 : vector<1x1x32xf32> to vector<1x32xf32>
    %23 = vector.broadcast %22 : vector<1x32xf32> to vector<6x32xf32>
    %24 = arith.addf %20, %23 : vector<6x32xf32>
    %25 = tpu.concatenate %16, %15 in 1 : vector<6x16xf32>, vector<6x16xf32> -> vector<6x32xf32>
    %c0_14 = arith.constant 0 : index
    %c0_15 = arith.constant 0 : index
    %c0_16 = arith.constant 0 : index
    %26 = vector.load %arg6[%c0_14, %c0_15, %c0_16] : memref<1x32x32xf32, #tpu.memory_space<vmem>>, vector<1x32x32xf32>
    %27 = vector.shape_cast %26 : vector<1x32x32xf32> to vector<32x32xf32>
    %cst_17 = arith.constant dense<0.000000e+00> : vector<6x32xf32>
    %28 = tpu.matmul %25, %27, %cst_17 {dimension_numbers = #tpu.dot_dimension_numbers<[1], [0], [0], [1], [0, 0, 1, 1], [], []>} : vector<6x32xf32>, vector<32x32xf32>, vector<6x32xf32> -> vector<6x32xf32>
    %c0_18 = arith.constant 0 : index
    %c0_19 = arith.constant 0 : index
    %c0_20 = arith.constant 0 : index
    %29 = vector.load %arg7[%c0_18, %c0_19, %c0_20] : memref<1x1x32xf32, #tpu.memory_space<vmem>>, vector<1x1x32xf32>
    %30 = vector.shape_cast %29 : vector<1x1x32xf32> to vector<1x32xf32>
    %31 = vector.broadcast %30 : vector<1x32xf32> to vector<6x32xf32>
    %32 = arith.addf %28, %31 : vector<6x32xf32>
    %cst_21 = arith.constant dense<0.000000e+00> : vector<8x32xf32>
    %33 = tpu.matmul %14, %24, %cst_21 {dimension_numbers = #tpu.dot_dimension_numbers<[0], [0], [1], [1], [0, 1, 1, 1], [], []>} : vector<6x8xf32>, vector<6x32xf32>, vector<8x32xf32> -> vector<8x32xf32>
    %cst_22 = arith.constant dense<0.000000e+00> : vector<8x32xf32>
    %34 = tpu.matmul %9, %32, %cst_22 {dimension_numbers = #tpu.dot_dimension_numbers<[0], [0], [1], [1], [0, 1, 1, 1], [], []>} : vector<6x8xf32>, vector<6x32xf32>, vector<8x32xf32> -> vector<8x32xf32>
    %35 = arith.addf %33, %34 : vector<8x32xf32>
    %c0_23 = arith.constant 0 : index
    %c0_24 = arith.constant 0 : index
    %c0_25 = arith.constant 0 : index
    %36 = vector.load %arg8[%c0_23, %c0_24, %c0_25] : memref<1x32x48xf32, #tpu.memory_space<vmem>>, vector<1x32x48xf32>
    %37 = vector.shape_cast %36 : vector<1x32x48xf32> to vector<32x48xf32>
    %cst_26 = arith.constant dense<0.000000e+00> : vector<8x48xf32>
    %38 = tpu.matmul %35, %37, %cst_26 {dimension_numbers = #tpu.dot_dimension_numbers<[1], [0], [0], [1], [0, 0, 1, 1], [], []>} : vector<8x32xf32>, vector<32x48xf32>, vector<8x48xf32> -> vector<8x48xf32>
    %c0_27 = arith.constant 0 : index
    %c0_28 = arith.constant 0 : index
    %c0_29 = arith.constant 0 : index
    %39 = vector.load %arg9[%c0_27, %c0_28, %c0_29] : memref<1x1x48xf32, #tpu.memory_space<vmem>>, vector<1x1x48xf32>
    %40 = vector.shape_cast %39 : vector<1x1x48xf32> to vector<1x48xf32>
    %41 = vector.broadcast %40 : vector<1x48xf32> to vector<8x48xf32>
    %42 = arith.addf %38, %41 : vector<8x48xf32>
    %c0_30 = arith.constant 0 : index
    %c0_31 = arith.constant 0 : index
    %c0_32 = arith.constant 0 : index
    %43 = vector.load %arg10[%c0_30, %c0_31, %c0_32] : memref<1x16x48xf32, #tpu.memory_space<vmem>>, vector<1x16x48xf32>
    %44 = vector.shape_cast %43 : vector<1x16x48xf32> to vector<16x48xf32>
    %cst_33 = arith.constant dense<0.000000e+00> : vector<8x48xf32>
    %45 = tpu.matmul %3, %44, %cst_33 {dimension_numbers = #tpu.dot_dimension_numbers<[1], [0], [0], [1], [0, 0, 1, 1], [], []>} : vector<8x16xf32>, vector<16x48xf32>, vector<8x48xf32> -> vector<8x48xf32>
    %c0_34 = arith.constant 0 : index
    %c0_35 = arith.constant 0 : index
    %c0_36 = arith.constant 0 : index
    %46 = vector.load %arg11[%c0_34, %c0_35, %c0_36] : memref<1x1x48xf32, #tpu.memory_space<vmem>>, vector<1x1x48xf32>
    %47 = vector.shape_cast %46 : vector<1x1x48xf32> to vector<1x48xf32>
    %48 = vector.broadcast %47 : vector<1x48xf32> to vector<8x48xf32>
    %49 = arith.addf %45, %48 : vector<8x48xf32>
    %50 = vector.extract_strided_slice %42 {offsets = [0, 0], sizes = [8, 16], strides = [1, 1]} : vector<8x48xf32> to vector<8x16xf32>
    %51 = vector.extract_strided_slice %49 {offsets = [0, 0], sizes = [8, 16], strides = [1, 1]} : vector<8x48xf32> to vector<8x16xf32>
    %52 = arith.addf %50, %51 : vector<8x16xf32>
    %53 = arith.negf %52 : vector<8x16xf32>
    %54 = math.exp %53 : vector<8x16xf32>
    %cst_37 = arith.constant 1.000000e+00 : f32
    %55 = vector.broadcast %cst_37 : f32 to vector<8x16xf32>
    %56 = arith.addf %55, %54 : vector<8x16xf32>
    %57 = arith.divf %55, %56 : vector<8x16xf32>
    %58 = vector.extract_strided_slice %42 {offsets = [0, 16], sizes = [8, 16], strides = [1, 1]} : vector<8x48xf32> to vector<8x16xf32>
    %59 = vector.extract_strided_slice %49 {offsets = [0, 16], sizes = [8, 16], strides = [1, 1]} : vector<8x48xf32> to vector<8x16xf32>
    %60 = arith.addf %58, %59 : vector<8x16xf32>
    %61 = arith.negf %60 : vector<8x16xf32>
    %62 = math.exp %61 : vector<8x16xf32>
    %cst_38 = arith.constant 1.000000e+00 : f32
    %63 = vector.broadcast %cst_38 : f32 to vector<8x16xf32>
    %64 = arith.addf %63, %62 : vector<8x16xf32>
    %65 = arith.divf %63, %64 : vector<8x16xf32>
    %66 = vector.extract_strided_slice %42 {offsets = [0, 32], sizes = [8, 16], strides = [1, 1]} : vector<8x48xf32> to vector<8x16xf32>
    %67 = vector.extract_strided_slice %49 {offsets = [0, 32], sizes = [8, 16], strides = [1, 1]} : vector<8x48xf32> to vector<8x16xf32>
    %68 = arith.mulf %57, %67 : vector<8x16xf32>
    %69 = arith.addf %66, %68 : vector<8x16xf32>
    %70 = math.tanh %69 : vector<8x16xf32>
    %cst_39 = arith.constant 1.000000e+00 : f32
    %71 = vector.broadcast %cst_39 : f32 to vector<8x16xf32>
    %72 = arith.subf %71, %65 : vector<8x16xf32>
    %73 = arith.mulf %72, %70 : vector<8x16xf32>
    %74 = arith.mulf %65, %3 : vector<8x16xf32>
    %75 = arith.addf %73, %74 : vector<8x16xf32>
    %c0_40 = arith.constant 0 : index
    %c0_41 = arith.constant 0 : index
    %76 = vector.load %arg13[%c0_40, %c0_41] : memref<8x16xf32, #tpu.memory_space<vmem>>, vector<8x16xf32>
    tpu.vector_store %arg13[%c0_40, %c0_41], %75 {strides = array<i32>} : memref<8x16xf32, #tpu.memory_space<vmem>>, vector<8x16xf32>,
    %c1_i32 = arith.constant 1 : i32
    %77 = arith.cmpi eq, %arg0, %c1_i32 : i32
    %78 = arith.extui %77 : i1 to i32
    %c0_i32_42 = arith.constant 0 : i32
    %79 = arith.cmpi ne, %78, %c0_i32_42 : i32
    scf.if %79 {
      %c0_43 = arith.constant 0 : index
      %c0_44 = arith.constant 0 : index
      %80 = vector.load %arg12[%c0_43, %c0_44] : memref<8x16xf32, #tpu.memory_space<vmem>>, vector<8x16xf32>
      tpu.vector_store %arg12[%c0_43, %c0_44], %75 {strides = array<i32>} : memref<8x16xf32, #tpu.memory_space<vmem>>, vector<8x16xf32>,
    } else {
    }
    return
  }
  func.func @transform_0(%arg0: i32) -> (i32, i32) {
    %c0_i32 = arith.constant 0 : i32
    %c0_i32_0 = arith.constant 0 : i32
    %c0_i32_1 = arith.constant 0 : i32
    return %c0_i32, %c0_i32_0 : i32, i32
  }
  func.func @transform_1(%arg0: i32) -> (i32, i32) {
    %c0_i32 = arith.constant 0 : i32
    %c0_i32_0 = arith.constant 0 : i32
    %c0_i32_1 = arith.constant 0 : i32
    return %c0_i32, %c0_i32_0 : i32, i32
  }
  func.func @transform_2(%arg0: i32) -> (i32, i32) {
    %c0_i32 = arith.constant 0 : i32
    %c0_i32_0 = arith.constant 0 : i32
    %c0_i32_1 = arith.constant 0 : i32
    return %c0_i32, %c0_i32_0 : i32, i32
  }
  func.func @transform_3(%arg0: i32) -> (i32, i32, i32) {
    %c0_i32 = arith.constant 0 : i32
    %c0_i32_0 = arith.constant 0 : i32
    %c0_i32_1 = arith.constant 0 : i32
    return %arg0, %c0_i32, %c0_i32_0 : i32, i32, i32
  }
  func.func @transform_4(%arg0: i32) -> (i32, i32, i32) {
    %c0_i32 = arith.constant 0 : i32
    %c0_i32_0 = arith.constant 0 : i32
    %c0_i32_1 = arith.constant 0 : i32
    return %arg0, %c0_i32, %c0_i32_0 : i32, i32, i32
  }
  func.func @transform_5(%arg0: i32) -> (i32, i32, i32) {
    %c0_i32 = arith.constant 0 : i32
    %c0_i32_0 = arith.constant 0 : i32
    %c0_i32_1 = arith.constant 0 : i32
    return %arg0, %c0_i32, %c0_i32_0 : i32, i32, i32
  }
  func.func @transform_6(%arg0: i32) -> (i32, i32, i32) {
    %c0_i32 = arith.constant 0 : i32
    %c0_i32_0 = arith.constant 0 : i32
    %c0_i32_1 = arith.constant 0 : i32
    return %arg0, %c0_i32, %c0_i32_0 : i32, i32, i32
  }
  func.func @transform_7(%arg0: i32) -> (i32, i32, i32) {
    %c0_i32 = arith.constant 0 : i32
    %c0_i32_0 = arith.constant 0 : i32
    %c0_i32_1 = arith.constant 0 : i32
    return %arg0, %c0_i32, %c0_i32_0 : i32, i32, i32
  }
  func.func @transform_8(%arg0: i32) -> (i32, i32, i32) {
    %c0_i32 = arith.constant 0 : i32
    %c0_i32_0 = arith.constant 0 : i32
    %c0_i32_1 = arith.constant 0 : i32
    return %arg0, %c0_i32, %c0_i32_0 : i32, i32, i32
  }
  func.func @transform_9(%arg0: i32) -> (i32, i32, i32) {
    %c0_i32 = arith.constant 0 : i32
    %c0_i32_0 = arith.constant 0 : i32
    %c0_i32_1 = arith.constant 0 : i32
    return %arg0, %c0_i32, %c0_i32_0 : i32, i32, i32
  }
  func.func @transform_10(%arg0: i32) -> (i32, i32, i32) {
    %c0_i32 = arith.constant 0 : i32
    %c0_i32_0 = arith.constant 0 : i32
    %c0_i32_1 = arith.constant 0 : i32
    return %arg0, %c0_i32, %c0_i32_0 : i32, i32, i32
  }
  func.func @transform_11(%arg0: i32) -> (i32, i32) {
    %c0_i32 = arith.constant 0 : i32
    %c0_i32_0 = arith.constant 0 : i32
    %c0_i32_1 = arith.constant 0 : i32
    return %c0_i32, %c0_i32_0 : i32, i32
  }
}

</mosaic_0001>

<llo_original>
// kernel: tpu_custom_call.1
$region0: #{tpu_custom_call.1}
  #allocation0 [shape = 'u32[]', space=smem, size = 0x4, offset = 0x4, fixed_abs, tag = 'smem constant byte address 0x4 - core index']
  #allocation1 [shape = 'u32[144,128]{1,0:T(1,128)}', space=vmem, size = 0x12000, scoped, tag = 'internal scratch']
  #allocation2 [shape = 'f32[8,16]{1,0:T(8,128)}', space=vmem, size = 0x1000, scoped, tag = 'scratch operand']
  %s0 = inlined_call_operand.vmem [shape: f32[8,16], index: 0, kind: input, shape index: {}]
  %s1 = inlined_call_operand.vmem [shape: s32[6,1], index: 1, kind: input, shape index: {}]
  %s2 = inlined_call_operand.vmem [shape: s32[6,1], index: 2, kind: input, shape index: {}]
  %s3 = inlined_call_operand.hbm [shape: f32[2,32,32], index: 3, kind: input, shape index: {}]
  %s4 = inlined_call_operand.vmem [shape: f32[2,1,32], index: 4, kind: input, shape index: {}]
  %s5 = inlined_call_operand.hbm [shape: f32[2,32,32], index: 5, kind: input, shape index: {}]
  %s6 = inlined_call_operand.vmem [shape: f32[2,1,32], index: 6, kind: input, shape index: {}]
  %s7 = inlined_call_operand.hbm [shape: f32[2,32,48], index: 7, kind: input, shape index: {}]
  %s8 = inlined_call_operand.vmem [shape: f32[2,1,48], index: 8, kind: input, shape index: {}]
  %s9 = inlined_call_operand.vmem [shape: f32[2,16,48], index: 9, kind: input, shape index: {}]
  %s10 = inlined_call_operand.vmem [shape: f32[2,1,48], index: 10, kind: input, shape index: {}]
  %s11 = inlined_call_operand.hbm [shape: f32[8,16], index: 11, kind: output, shape index: {}]
  %s12 = sld [smem:[#allocation0]]
  $region97: #{tpu_custom_call.1} parent=0
    _
  %s14 = ssub.s32 1, %s12
  %s15 = scalar_select 0, %s14, %s12
  $region1: #{tpu_custom_call.1} parent=0
    #allocation3 [shape = 'u8[32768]{0}', space=vmem, size = 0x8000, scoped, tag = 'input window, operand 3']
    #allocation4 [shape = 's32[2]{0}', space=sflag, size = 0x8, scoped, tag = 'scoped memory for tpu_custom_call.1']
    #allocation5 [shape = 's32[2]{0}', space=sflag, size = 0x8, scoped, tag = 'scoped memory for tpu_custom_call.1']
    #allocation6 [shape = 'u8[32768]{0}', space=vmem, size = 0x8000, scoped, tag = 'input window, operand 5']
    #allocation7 [shape = 's32[2]{0}', space=sflag, size = 0x8, scoped, tag = 'scoped memory for tpu_custom_call.1']
    #allocation8 [shape = 'u8[32768]{0}', space=vmem, size = 0x8000, scoped, tag = 'input window, operand 7']
    #allocation9 [shape = 'u8[4096]{0}', space=vmem, size = 0x1000, scoped, tag = 'output window, operand 0, single buffered']
    %16 = vsyncpa [#allocation4], 0
    %s17 = scalar_lea.sflag [#allocation4], 1
    %18 = vsyncpa %s17, 0
    %19 = vsyncpa [#allocation7], 0
    %s20 = scalar_lea.sflag [#allocation7], 1
    %21 = vsyncpa %s20, 0
    %22 = vsyncpa [#allocation5], 0
    loop: start=0, step=1, limit=4
    $region2: #{tpu_custom_call.1} parent=1 // loop_pre_header
      _
    $region3: #{tpu_custom_call.1} parent=1 // loop_header
      %s24 = sphi 0, %s28
      %p25 = scmp.ge.s32.totalorder %s24, 4
      %s32 = sphi 0, %s32
      %s34 = sphi 0, %s32
      %s35 = sphi 0, %s34
      %s49 = sphi 0, %s35
      %s53 = sphi 0, %s53
      %s55 = sphi 0, %s53
      %s56 = sphi 0, %s55
      %s70 = sphi 0, %s56
      %s74 = sphi 0, %s74
      %s76 = sphi 0, %s74
      %s77 = sphi 0, %s76
      %s91 = sphi 0, %s77
      %s97 = sphi 0, %s99
      %s100 = sphi 0, %s97
      %s101 = sphi 0, %s100
      %s117 = sphi 0, %s101
      %s123 = sphi 0, %s125
      %s126 = sphi 0, %s123
      %s127 = sphi 0, %s126
      %s143 = sphi 0, %s127
      %s149 = sphi 0, %s151
      %s152 = sphi 0, %s149
      %s153 = sphi 0, %s152
      %s169 = sphi 0, %s153
      %s175 = sphi 0, %s177
      %s178 = sphi 0, %s175
      %s179 = sphi 0, %s178
      %s195 = sphi 0, %s179
      %s201 = sphi 0, %s203
      %s204 = sphi 0, %s201
      %s205 = sphi 0, %s204
      %s221 = sphi 0, %s205
      %s227 = sphi 0, %s229
      %s230 = sphi 0, %s227
      %s231 = sphi 0, %s230
      %s247 = sphi 0, %s231
      %s253 = sphi 0, %s255
      %s256 = sphi 0, %s253
      %s257 = sphi 0, %s256
      %s273 = sphi 0, %s257
      %s279 = sphi 0, %s281
      %s282 = sphi 0, %s279
      %s283 = sphi 0, %s282
      %s299 = sphi 0, %s283
      %s303 = sphi 0, %s303
      %s305 = sphi 0, %s303
      %s306 = sphi 0, %s305
      %s320 = sphi 0, %s306
    $region4: #{tpu_custom_call.1} parent=1 // loop_header_branch
      %27 = sbr.rel (%p25) target = $region8
    $region5: #{tpu_custom_call.1} parent=1 // loop_body
      %s29 = ssub.s32 %s24, 1
      %s30 = ssub.s32 %s24, 2
      %s31 = sadd.s32 %s24, 1
      %s33 = sadd.s32 %s32, 1
      %p36 = scmp.eq.s32.totalorder %s24, 1
      %p37 = scmp.ne.s32.totalorder %s32, %s34
      %p38 = scmp.eq.s32.totalorder %s24, 0
      %p39 = por %p37, %p38
      %p40 = scmp.ne.s32.totalorder %s32, %s34
      %p41 = scmp.eq.s32.totalorder %s29, 1
      %p42 = por %p40, %p41
      %p43 = scmp.ne.s32.totalorder %s34, %s35
      %p44 = scmp.eq.s32.totalorder %s29, 0
      %p45 = por %p43, %p44
      %p46 = scmp.ne.s32.totalorder %s34, %s35
      %p47 = scmp.eq.s32.totalorder %s30, 1
      %p48 = por %p46, %p47
      %p50 = scmp.ne.s32.totalorder %s35, %s49
      %p51 = scmp.eq.s32.totalorder %s30, 0
      %p52 = por %p50, %p51
      %s54 = sadd.s32 %s53, 1
      %p57 = scmp.eq.s32.totalorder %s24, 1
      %p58 = scmp.ne.s32.totalorder %s53, %s55
      %p59 = scmp.eq.s32.totalorder %s24, 0
      %p60 = por %p58, %p59
      %p61 = scmp.ne.s32.totalorder %s53, %s55
      %p62 = scmp.eq.s32.totalorder %s29, 1
      %p63 = por %p61, %p62
      %p64 = scmp.ne.s32.totalorder %s55, %s56
      %p65 = scmp.eq.s32.totalorder %s29, 0
      %p66 = por %p64, %p65
      %p67 = scmp.ne.s32.totalorder %s55, %s56
      %p68 = scmp.eq.s32.totalorder %s30, 1
      %p69 = por %p67, %p68
      %p71 = scmp.ne.s32.totalorder %s56, %s70
      %p72 = scmp.eq.s32.totalorder %s30, 0
      %p73 = por %p71, %p72
      %s75 = sadd.s32 %s74, 1
      %p78 = scmp.eq.s32.totalorder %s24, 1
      %p79 = scmp.ne.s32.totalorder %s74, %s76
      %p80 = scmp.eq.s32.totalorder %s24, 0
      %p81 = por %p79, %p80
      %p82 = scmp.ne.s32.totalorder %s74, %s76
      %p83 = scmp.eq.s32.totalorder %s29, 1
      %p84 = por %p82, %p83
      %p85 = scmp.ne.s32.totalorder %s76, %s77
      %p86 = scmp.eq.s32.totalorder %s29, 0
      %p87 = por %p85, %p86
      %p88 = scmp.ne.s32.totalorder %s76, %s77
      %p89 = scmp.eq.s32.totalorder %s30, 1
      %p90 = por %p88, %p89
      %p92 = scmp.ne.s32.totalorder %s77, %s91
      %p93 = scmp.eq.s32.totalorder %s30, 0
      %p94 = por %p92, %p93
      %s95 = ssub.s32 %s24, %s31
      %p96 = scmp.eq.s32.totalorder %s95, 0
      %s98 = sadd.s32 %s97, 1
      %s99 = scalar_select %p96, %s97, %s98
      %p102 = pneg %p96
      %p103 = scmp.eq.s32.totalorder %s24, 1
      %p104 = por %p102, %p103
      %p105 = scmp.ne.s32.totalorder %s97, %s100
      %p106 = scmp.eq.s32.totalorder %s24, 0
      %p107 = por %p105, %p106
      %p108 = scmp.ne.s32.totalorder %s97, %s100
      %p109 = scmp.eq.s32.totalorder %s29, 1
      %p110 = por %p108, %p109
      %p111 = scmp.ne.s32.totalorder %s100, %s101
      %p112 = scmp.eq.s32.totalorder %s29, 0
      %p113 = por %p111, %p112
      %p114 = scmp.ne.s32.totalorder %s100, %s101
      %p115 = scmp.eq.s32.totalorder %s30, 1
      %p116 = por %p114, %p115
      %p118 = scmp.ne.s32.totalorder %s101, %s117
      %p119 = scmp.eq.s32.totalorder %s30, 0
      %p120 = por %p118, %p119
      %s121 = ssub.s32 %s24, %s31
      %p122 = scmp.eq.s32.totalorder %s121, 0
      %s124 = sadd.s32 %s123, 1
      %s125 = scalar_select %p122, %s123, %s124
      %p128 = pneg %p122
      %p129 = scmp.eq.s32.totalorder %s24, 1
      %p130 = por %p128, %p129
      %p131 = scmp.ne.s32.totalorder %s123, %s126
      %p132 = scmp.eq.s32.totalorder %s24, 0
      %p133 = por %p131, %p132
      %p134 = scmp.ne.s32.totalorder %s123, %s126
      %p135 = scmp.eq.s32.totalorder %s29, 1
      %p136 = por %p134, %p135
      %p137 = scmp.ne.s32.totalorder %s126, %s127
      %p138 = scmp.eq.s32.totalorder %s29, 0
      %p139 = por %p137, %p138
      %p140 = scmp.ne.s32.totalorder %s126, %s127
      %p141 = scmp.eq.s32.totalorder %s30, 1
      %p142 = por %p140, %p141
      %p144 = scmp.ne.s32.totalorder %s127, %s143
      %p145 = scmp.eq.s32.totalorder %s30, 0
      %p146 = por %p144, %p145
      %s147 = ssub.s32 %s24, %s31
      %p148 = scmp.eq.s32.totalorder %s147, 0
      %s150 = sadd.s32 %s149, 1
      %s151 = scalar_select %p148, %s149, %s150
      %p154 = pneg %p148
      %p155 = scmp.eq.s32.totalorder %s24, 1
      %p156 = por %p154, %p155
      %p157 = scmp.ne.s32.totalorder %s149, %s152
      %p158 = scmp.eq.s32.totalorder %s24, 0
      %p159 = por %p157, %p158
      %p160 = scmp.ne.s32.totalorder %s149, %s152
      %p161 = scmp.eq.s32.totalorder %s29, 1
      %p162 = por %p160, %p161
      %p163 = scmp.ne.s32.totalorder %s152, %s153
      %p164 = scmp.eq.s32.totalorder %s29, 0
      %p165 = por %p163, %p164
      %p166 = scmp.ne.s32.totalorder %s152, %s153
      %p167 = scmp.eq.s32.totalorder %s30, 1
      %p168 = por %p166, %p167
      %p170 = scmp.ne.s32.totalorder %s153, %s169
      %p171 = scmp.eq.s32.totalorder %s30, 0
      %p172 = por %p170, %p171
      %s173 = ssub.s32 %s24, %s31
      %p174 = scmp.eq.s32.totalorder %s173, 0
      %s176 = sadd.s32 %s175, 1
      %s177 = scalar_select %p174, %s175, %s176
      %p180 = pneg %p174
      %p181 = scmp.eq.s32.totalorder %s24, 1
      %p182 = por %p180, %p181
      %p183 = scmp.ne.s32.totalorder %s175, %s178
      %p184 = scmp.eq.s32.totalorder %s24, 0
      %p185 = por %p183, %p184
      %p186 = scmp.ne.s32.totalorder %s175, %s178
      %p187 = scmp.eq.s32.totalorder %s29, 1
      %p188 = por %p186, %p187
      %p189 = scmp.ne.s32.totalorder %s178, %s179
      %p190 = scmp.eq.s32.totalorder %s29, 0
      %p191 = por %p189, %p190
      %p192 = scmp.ne.s32.totalorder %s178, %s179
      %p193 = scmp.eq.s32.totalorder %s30, 1
      %p194 = por %p192, %p193
      %p196 = scmp.ne.s32.totalorder %s179, %s195
      %p197 = scmp.eq.s32.totalorder %s30, 0
      %p198 = por %p196, %p197
      %s199 = ssub.s32 %s24, %s31
      %p200 = scmp.eq.s32.totalorder %s199, 0
      %s202 = sadd.s32 %s201, 1
      %s203 = scalar_select %p200, %s201, %s202
      %p206 = pneg %p200
      %p207 = scmp.eq.s32.totalorder %s24, 1
      %p208 = por %p206, %p207
      %p209 = scmp.ne.s32.totalorder %s201, %s204
      %p210 = scmp.eq.s32.totalorder %s24, 0
      %p211 = por %p209, %p210
      %p212 = scmp.ne.s32.totalorder %s201, %s204
      %p213 = scmp.eq.s32.totalorder %s29, 1
      %p214 = por %p212, %p213
      %p215 = scmp.ne.s32.totalorder %s204, %s205
      %p216 = scmp.eq.s32.totalorder %s29, 0
      %p217 = por %p215, %p216
      %p218 = scmp.ne.s32.totalorder %s204, %s205
      %p219 = scmp.eq.s32.totalorder %s30, 1
      %p220 = por %p218, %p219
      %p222 = scmp.ne.s32.totalorder %s205, %s221
      %p223 = scmp.eq.s32.totalorder %s30, 0
      %p224 = por %p222, %p223
      %s225 = ssub.s32 %s24, %s31
      %p226 = scmp.eq.s32.totalorder %s225, 0
      %s228 = sadd.s32 %s227, 1
      %s229 = scalar_select %p226, %s227, %s228
      %p232 = pneg %p226
      %p233 = scmp.eq.s32.totalorder %s24, 1
      %p234 = por %p232, %p233
      %p235 = scmp.ne.s32.totalorder %s227, %s230
      %p236 = scmp.eq.s32.totalorder %s24, 0
      %p237 = por %p235, %p236
      %p238 = scmp.ne.s32.totalorder %s227, %s230
      %p239 = scmp.eq.s32.totalorder %s29, 1
      %p240 = por %p238, %p239
      %p241 = scmp.ne.s32.totalorder %s230, %s231
      %p242 = scmp.eq.s32.totalorder %s29, 0
      %p243 = por %p241, %p242
      %p244 = scmp.ne.s32.totalorder %s230, %s231
      %p245 = scmp.eq.s32.totalorder %s30, 1
      %p246 = por %p244, %p245
      %p248 = scmp.ne.s32.totalorder %s231, %s247
      %p249 = scmp.eq.s32.totalorder %s30, 0
      %p250 = por %p248, %p249
      %s251 = ssub.s32 %s24, %s31
      %p252 = scmp.eq.s32.totalorder %s251, 0
      %s254 = sadd.s32 %s253, 1
      %s255 = scalar_select %p252, %s253, %s254
      %p258 = pneg %p252
      %p259 = scmp.eq.s32.totalorder %s24, 1
      %p260 = por %p258, %p259
      %p261 = scmp.ne.s32.totalorder %s253, %s256
      %p262 = scmp.eq.s32.totalorder %s24, 0
      %p263 = por %p261, %p262
      %p264 = scmp.ne.s32.totalorder %s253, %s256
      %p265 = scmp.eq.s32.totalorder %s29, 1
      %p266 = por %p264, %p265
      %p267 = scmp.ne.s32.totalorder %s256, %s257
      %p268 = scmp.eq.s32.totalorder %s29, 0
      %p269 = por %p267, %p268
      %p270 = scmp.ne.s32.totalorder %s256, %s257
      %p271 = scmp.eq.s32.totalorder %s30, 1
      %p272 = por %p270, %p271
      %p274 = scmp.ne.s32.totalorder %s257, %s273
      %p275 = scmp.eq.s32.totalorder %s30, 0
      %p276 = por %p274, %p275
      %s277 = ssub.s32 %s24, %s31
      %p278 = scmp.eq.s32.totalorder %s277, 0
      %s280 = sadd.s32 %s279, 1
      %s281 = scalar_select %p278, %s279, %s280
      %p284 = pneg %p278
      %p285 = scmp.eq.s32.totalorder %s24, 1
      %p286 = por %p284, %p285
      %p287 = scmp.ne.s32.totalorder %s279, %s282
      %p288 = scmp.eq.s32.totalorder %s24, 0
      %p289 = por %p287, %p288
      %p290 = scmp.ne.s32.totalorder %s279, %s282
      %p291 = scmp.eq.s32.totalorder %s29, 1
      %p292 = por %p290, %p291
      %p293 = scmp.ne.s32.totalorder %s282, %s283
      %p294 = scmp.eq.s32.totalorder %s29, 0
      %p295 = por %p293, %p294
      %p296 = scmp.ne.s32.totalorder %s282, %s283
      %p297 = scmp.eq.s32.totalorder %s30, 1
      %p298 = por %p296, %p297
      %p300 = scmp.ne.s32.totalorder %s283, %s299
      %p301 = scmp.eq.s32.totalorder %s30, 0
      %p302 = por %p300, %p301
      %s304 = sadd.s32 %s303, 1
      %p307 = scmp.eq.s32.totalorder %s24, 1
      %p308 = scmp.ne.s32.totalorder %s303, %s305
      %p309 = scmp.eq.s32.totalorder %s24, 0
      %p310 = por %p308, %p309
      %p311 = scmp.ne.s32.totalorder %s303, %s305
      %p312 = scmp.eq.s32.totalorder %s29, 1
      %p313 = por %p311, %p312
      %p314 = scmp.ne.s32.totalorder %s305, %s306
      %p315 = scmp.eq.s32.totalorder %s29, 0
      %p316 = por %p314, %p315
      %p317 = scmp.ne.s32.totalorder %s305, %s306
      %p318 = scmp.eq.s32.totalorder %s30, 1
      %p319 = por %p317, %p318
      %p321 = scmp.ne.s32.totalorder %s306, %s320
      %p322 = scmp.eq.s32.totalorder %s30, 0
      %p323 = por %p321, %p322
      %p324 = scmp.le.s32.totalorder 1, %s24
      %p325 = scmp.lt.s32.totalorder %s24, 3
      %p326 = pnand %p324, %p325
      %p327 = pneg %p326
      // Predicated region
      $region9: #{tpu_custom_call.1} parent=5 // pred_check
        _
      $region10: #{tpu_custom_call.1} parent=5 // pred_check_branch
        %329 = sbr.rel (%p326) target = $region12
      $region11: #{tpu_custom_call.1} parent=5 // pred_region
        %s330 = ssub.s32 %s24, 1
        // Predicated region
        $region13: #{tpu_custom_call.1} parent=11 // pred_check
          %p331 = pneg %p45
        $region14: #{tpu_custom_call.1} parent=11 // pred_check_branch
          %333 = sbr.rel (%p331) target = $region16
        $region15: #{tpu_custom_call.1} parent=11 // pred_region
          _
        $region16: #{tpu_custom_call.1} parent=11 // pred_fallthru
          _
        // Predicated region
        $region17: #{tpu_custom_call.1} parent=11 // pred_check
          %p334 = pneg %p66
        $region18: #{tpu_custom_call.1} parent=11 // pred_check_branch
          %336 = sbr.rel (%p334) target = $region20
        $region19: #{tpu_custom_call.1} parent=11 // pred_region
          _
        $region20: #{tpu_custom_call.1} parent=11 // pred_fallthru
          _
        // Predicated region
        $region21: #{tpu_custom_call.1} parent=11 // pred_check
          %p337 = pneg %p87
        $region22: #{tpu_custom_call.1} parent=11 // pred_check_branch
          %339 = sbr.rel (%p337) target = $region24
        $region23: #{tpu_custom_call.1} parent=11 // pred_region
          _
        $region24: #{tpu_custom_call.1} parent=11 // pred_fallthru
          _
      $region12: #{tpu_custom_call.1} parent=5 // pred_fallthru
        _
      %p340 = scmp.lt.s32.totalorder %s24, 2
      // Predicated region
      $region25: #{tpu_custom_call.1} parent=5 // pred_check
        %p341 = pneg %p340
      $region26: #{tpu_custom_call.1} parent=5 // pred_check_branch
        %343 = sbr.rel (%p341) target = $region28
      $region27: #{tpu_custom_call.1} parent=5 // pred_region
        // Predicated region
        $region29: #{tpu_custom_call.1} parent=27 // pred_check
          %p344 = pneg %p107
        $region30: #{tpu_custom_call.1} parent=27 // pred_check_branch
          %346 = sbr.rel (%p344) target = $region32
        $region31: #{tpu_custom_call.1} parent=27 // pred_region
          %s347 = sand.u32 %s97, 1
          %s348 = scalar_lea.sflag [#allocation4], %s347
          %s349 = sand.u32 %s97, 1
          %s350 = smul.addr %s349, 32
          %s351 = scalar_lea.vmem [#allocation3], %s350
          %s353 = ssub.s32 512, 512
          %354 = vsyncadd %s348, %s353
          %s355 = smul.addr %s24, 4
          %s356 = smul.addr %s355, 128
          %s357 = scalar_lea.hbm %s3, %s356
          %s358 = sshll.u32 %s351, 4
          %s359 = int_to_ptr.vmem [resolvable:$true] %s358
          %364 = dma.hbm_to_vmem [thread:$0]  %s357, 512, %s359, %s348, 128, 128, 8
        $region32: #{tpu_custom_call.1} parent=27 // pred_fallthru
          _
        // Predicated region
        $region33: #{tpu_custom_call.1} parent=27 // pred_check
          %p365 = pneg %p133
        $region34: #{tpu_custom_call.1} parent=27 // pred_check_branch
          %367 = sbr.rel (%p365) target = $region36
        $region35: #{tpu_custom_call.1} parent=27 // pred_region
          %p368 = scmp.lt.s32.totalorder %s24, 1
          %s369 = scalar_select %p368, %s24, 1
          %s370 = scalar_lea.vmem %s4, %s369
        $region36: #{tpu_custom_call.1} parent=27 // pred_fallthru
          _
        // Predicated region
        $region37: #{tpu_custom_call.1} parent=27 // pred_check
          %p371 = pneg %p159
        $region38: #{tpu_custom_call.1} parent=27 // pred_check_branch
          %373 = sbr.rel (%p371) target = $region40
        $region39: #{tpu_custom_call.1} parent=27 // pred_region
          %s374 = sand.u32 %s24, 1
          %s375 = scalar_lea.sflag [#allocation7], %s374
          %s376 = sand.u32 %s149, 1
          %s377 = smul.addr %s376, 32
          %s378 = scalar_lea.vmem [#allocation6], %s377
          %s380 = ssub.s32 512, 512
          %381 = vsyncadd %s375, %s380
          %s382 = smul.addr %s24, 4
          %s383 = smul.addr %s382, 128
          %s384 = scalar_lea.hbm %s5, %s383
          %s385 = sshll.u32 %s378, 4
          %s386 = int_to_ptr.vmem [resolvable:$true] %s385
          %391 = dma.hbm_to_vmem [thread:$0]  %s384, 512, %s386, %s375, 128, 128, 8
        $region40: #{tpu_custom_call.1} parent=27 // pred_fallthru
          _
        // Predicated region
        $region41: #{tpu_custom_call.1} parent=27 // pred_check
          %p392 = pneg %p185
        $region42: #{tpu_custom_call.1} parent=27 // pred_check_branch
          %394 = sbr.rel (%p392) target = $region44
        $region43: #{tpu_custom_call.1} parent=27 // pred_region
          %p395 = scmp.lt.s32.totalorder %s24, 1
          %s396 = scalar_select %p395, %s24, 1
          %s397 = scalar_lea.vmem %s6, %s396
        $region44: #{tpu_custom_call.1} parent=27 // pred_fallthru
          _
        // Predicated region
        $region45: #{tpu_custom_call.1} parent=27 // pred_check
          %p398 = pneg %p211
        $region46: #{tpu_custom_call.1} parent=27 // pred_check_branch
          %400 = sbr.rel (%p398) target = $region48
        $region47: #{tpu_custom_call.1} parent=27 // pred_region
          %s401 = sand.u32 %s24, 1
          %s402 = scalar_lea.sflag [#allocation7], %s401
          %s403 = sand.u32 %s201, 1
          %s404 = smul.addr %s403, 32
          %s405 = scalar_lea.vmem [#allocation8], %s404
          %s407 = ssub.s32 512, 512
          %408 = vsyncadd %s402, %s407
          %s409 = smul.addr %s24, 4
          %s410 = smul.addr %s409, 128
          %s411 = scalar_lea.hbm %s7, %s410
          %s412 = sshll.u32 %s405, 4
          %s413 = int_to_ptr.vmem [resolvable:$true] %s412
          %418 = dma.hbm_to_vmem [thread:$0]  %s411, 512, %s413, %s402, 128, 128, 8
        $region48: #{tpu_custom_call.1} parent=27 // pred_fallthru
          _
        // Predicated region
        $region49: #{tpu_custom_call.1} parent=27 // pred_check
          %p419 = pneg %p237
        $region50: #{tpu_custom_call.1} parent=27 // pred_check_branch
          %421 = sbr.rel (%p419) target = $region52
        $region51: #{tpu_custom_call.1} parent=27 // pred_region
          %p422 = scmp.lt.s32.totalorder %s24, 1
          %s423 = scalar_select %p422, %s24, 1
          %s424 = scalar_lea.vmem %s8, %s423
        $region52: #{tpu_custom_call.1} parent=27 // pred_fallthru
          _
        // Predicated region
        $region53: #{tpu_custom_call.1} parent=27 // pred_check
          %p425 = pneg %p263
        $region54: #{tpu_custom_call.1} parent=27 // pred_check_branch
          %427 = sbr.rel (%p425) target = $region56
        $region55: #{tpu_custom_call.1} parent=27 // pred_region
          %p428 = scmp.lt.s32.totalorder %s24, 1
          %s429 = scalar_select %p428, %s24, 1
          %s430 = smul.addr %s429, 2
          %s431 = smul.addr %s430, 8
          %s432 = scalar_lea.vmem %s9, %s431
        $region56: #{tpu_custom_call.1} parent=27 // pred_fallthru
          _
        // Predicated region
        $region57: #{tpu_custom_call.1} parent=27 // pred_check
          %p433 = pneg %p289
        $region58: #{tpu_custom_call.1} parent=27 // pred_check_branch
          %435 = sbr.rel (%p433) target = $region60
        $region59: #{tpu_custom_call.1} parent=27 // pred_region
          %p436 = scmp.lt.s32.totalorder %s24, 1
          %s437 = scalar_select %p436, %s24, 1
          %s438 = scalar_lea.vmem %s10, %s437
        $region60: #{tpu_custom_call.1} parent=27 // pred_fallthru
          _
      $region28: #{tpu_custom_call.1} parent=5 // pred_fallthru
        _
      %p439 = scmp.le.s32.totalorder 1, %s24
      %p440 = scmp.lt.s32.totalorder %s24, 3
      %p441 = pnand %p439, %p440
      %p442 = pneg %p441
      // Predicated region
      $region61: #{tpu_custom_call.1} parent=5 // pred_check
        _
      $region62: #{tpu_custom_call.1} parent=5 // pred_check_branch
        %444 = sbr.rel (%p441) target = $region64
      $region63: #{tpu_custom_call.1} parent=5 // pred_region
        %s445 = ssub.s32 %s24, 1
        %s446 = sand.u32 %s100, 1
        %s447 = scalar_lea.sflag [#allocation4], %s446
        %s448 = sand.u32 %s100, 1
        %s449 = smul.addr %s448, 32
        %s450 = scalar_lea.vmem [#allocation3], %s449
        // Predicated region
        $region65: #{tpu_custom_call.1} parent=63 // pred_check
          %p451 = pneg %p113
        $region66: #{tpu_custom_call.1} parent=63 // pred_check_branch
          %453 = sbr.rel (%p451) target = $region68
        $region67: #{tpu_custom_call.1} parent=63 // pred_region
          %454 = dma.done %s447, 512
        $region68: #{tpu_custom_call.1} parent=63 // pred_fallthru
          _
        %s455 = sand.u32 %s29, 1
        %s456 = scalar_lea.sflag [#allocation7], %s455
        %s457 = sand.u32 %s152, 1
        %s458 = smul.addr %s457, 32
        %s459 = scalar_lea.vmem [#allocation6], %s458
        // Predicated region
        $region69: #{tpu_custom_call.1} parent=63 // pred_check
          %p460 = pneg %p165
        $region70: #{tpu_custom_call.1} parent=63 // pred_check_branch
          %462 = sbr.rel (%p460) target = $region72
        $region71: #{tpu_custom_call.1} parent=63 // pred_region
          %463 = dma.done %s456, 512
        $region72: #{tpu_custom_call.1} parent=63 // pred_fallthru
          _
        %s464 = sand.u32 %s29, 1
        %s465 = scalar_lea.sflag [#allocation7], %s464
        %s466 = sand.u32 %s204, 1
        %s467 = smul.addr %s466, 32
        %s468 = scalar_lea.vmem [#allocation8], %s467
        // Predicated region
        $region73: #{tpu_custom_call.1} parent=63 // pred_check
          %p469 = pneg %p217
        $region74: #{tpu_custom_call.1} parent=63 // pred_check_branch
          %471 = sbr.rel (%p469) target = $region76
        $region75: #{tpu_custom_call.1} parent=63 // pred_region
          %472 = dma.done %s465, 512
        $region76: #{tpu_custom_call.1} parent=63 // pred_fallthru
          _
        %p473 = pneg %p45
        %p474 = pneg %p42
        %p475 = pneg %p66
        %p476 = pneg %p63
        %p477 = pneg %p87
        %p478 = pneg %p84
        %s479 = sand.u32 %s100, 1
        %s480 = scalar_lea.sflag [#allocation4], %s479
        %s481 = sand.u32 %s100, 1
        %s482 = smul.addr %s481, 32
        %s483 = scalar_lea.vmem [#allocation3], %s482
        %p484 = pneg %p113
        %p485 = pneg %p110
        %p486 = scmp.lt.s32.totalorder %s29, 1
        %s487 = scalar_select %p486, %s29, 1
        %s488 = scalar_lea.vmem %s4, %s487
        %p489 = pneg %p139
        %p490 = pneg %p136
        %s491 = sand.u32 %s29, 1
        %s492 = scalar_lea.sflag [#allocation7], %s491
        %s493 = sand.u32 %s152, 1
        %s494 = smul.addr %s493, 32
        %s495 = scalar_lea.vmem [#allocation6], %s494
        %p496 = pneg %p165
        %p497 = pneg %p162
        %p498 = scmp.lt.s32.totalorder %s29, 1
        %s499 = scalar_select %p498, %s29, 1
        %s500 = scalar_lea.vmem %s6, %s499
        %p501 = pneg %p191
        %p502 = pneg %p188
        %s503 = sand.u32 %s29, 1
        %s504 = scalar_lea.sflag [#allocation7], %s503
        %s505 = sand.u32 %s204, 1
        %s506 = smul.addr %s505, 32
        %s507 = scalar_lea.vmem [#allocation8], %s506
        %p508 = pneg %p217
        %p509 = pneg %p214
        %p510 = scmp.lt.s32.totalorder %s29, 1
        %s511 = scalar_select %p510, %s29, 1
        %s512 = scalar_lea.vmem %s8, %s511
        %p513 = pneg %p243
        %p514 = pneg %p240
        %p515 = scmp.lt.s32.totalorder %s29, 1
        %s516 = scalar_select %p515, %s29, 1
        %s517 = smul.addr %s516, 2
        %s518 = smul.addr %s517, 8
        %s519 = scalar_lea.vmem %s9, %s518
        %p520 = pneg %p269
        %p521 = pneg %p266
        %p522 = scmp.lt.s32.totalorder %s29, 1
        %s523 = scalar_select %p522, %s29, 1
        %s524 = scalar_lea.vmem %s10, %s523
        %p525 = pneg %p295
        %p526 = pneg %p292
        %p527 = pneg %p316
        %p528 = pneg %p313
        %p529 = scmp.lt.s32.totalorder %s29, 1
        %s530 = scalar_select %p529, %s29, 1
        %s531 = scalar_lea.vmem %s4, %s530
        %p532 = scmp.lt.s32.totalorder %s29, 1
        %s533 = scalar_select %p532, %s29, 1
        %s534 = scalar_lea.vmem %s6, %s533
        %p535 = scmp.lt.s32.totalorder %s29, 1
        %s536 = scalar_select %p535, %s29, 1
        %s537 = scalar_lea.vmem %s8, %s536
        %p538 = scmp.lt.s32.totalorder %s29, 1
        %s539 = scalar_select %p538, %s29, 1
        %s540 = smul.addr %s539, 2
        %s541 = smul.addr %s540, 8
        %s542 = scalar_lea.vmem %s9, %s541
        %p543 = scmp.lt.s32.totalorder %s29, 1
        %s544 = scalar_select %p543, %s29, 1
        %s545 = scalar_lea.vmem %s10, %s544
        %p546 = scmp.eq.s32.totalorder %s29, 0
        // Predicated region
        $region77: #{tpu_custom_call.1} parent=63 // pred_check
          %p547 = pneg %p546
        $region78: #{tpu_custom_call.1} parent=63 // pred_check_branch
          %549 = sbr.rel (%p547) target = $region80
        $region79: #{tpu_custom_call.1} parent=63 // pred_region
          %v550 = vld [vmem:[%s0] sm:$0xff]
          %vm551 = vcmask 130048
          %552 = vst.msk [vmem:[#allocation2] sm:$0xff] %vm551, %v550
        $region80: #{tpu_custom_call.1} parent=63 // pred_fallthru
          _
        %v553 = vld [vmem:[#allocation2] sm:$0xff]
        %v554 = vlaneseq
        %v555 = vand.u32 %v554, 127
        %v556 = vld [vmem:[%s1] sm:$0x3f]
        %557 = vset.pattern.permute.xlu0 0
        %558 = vperm.xlu0 %557, %v556
        %v559 = vpop.permute.xlu0 %558
        %vm560 = vcmp.eq.s32.totalorder %v555, %v559
        %v561 = vsel %vm560, 1, 0
        %v562 = vcvt.s32.f32 %v561
        %v563 = vld [vmem:[%s2] sm:$0x3f]
        %564 = vset.pattern.permute.xlu0 0
        %565 = vperm.xlu0 %564, %v563
        %v566 = vpop.permute.xlu0 %565
        %vm567 = vcmp.eq.s32.totalorder %v555, %v566
        %v568 = vsel %vm567, 1, 0
        %v569 = vcvt.s32.f32 %v568
        %vm570 = vcmask 64512
        %v572 = vsel %vm570, %v562, 0
        %574 = vmatprep.subr.mxu0 0.0
        %575 = vmatpush1.msra.mxu0 %v553
        %576 = vmatprep.subr.mxu0 0.0
        %577 = vmatpush1.msra.mxu0 0.0
        %578 = vmatprep.subr.mxu0 0.0
        %579 = vmatpush1.msra.mxu0 0.0
        %580 = vmatprep.subr.mxu0 0.0
        %581 = vmatpush1.msra.mxu0 0.0
        %582 = vmatprep.subr.mxu0 0.0
        %583 = vmatpush1.msra.mxu0 0.0
        %584 = vmatprep.subr.mxu0 0.0
        %585 = vmatpush1.msra.mxu0 0.0
        %586 = vmatprep.subr.mxu0 0.0
        %587 = vmatpush1.msra.mxu0 0.0
        %588 = vmatprep.subr.mxu0 0.0
        %589 = vmatpush1.msra.mxu0 0.0
        %590 = vmatprep.subr.mxu0 0.0
        %591 = vmatpush1.msra.mxu0 0.0
        %592 = vmatprep.subr.mxu0 0.0
        %593 = vmatpush1.msra.mxu0 0.0
        %594 = vmatprep.subr.mxu0 0.0
        %595 = vmatpush1.msra.mxu0 0.0
        %596 = vmatprep.subr.mxu0 0.0
        %597 = vmatpush1.msra.mxu0 0.0
        %598 = vmatprep.subr.mxu0 0.0
        %599 = vmatpush1.msra.mxu0 0.0
        %600 = vmatprep.subr.mxu0 0.0
        %601 = vmatpush1.msra.mxu0 0.0
        %602 = vmatprep.subr.mxu0 0.0
        %603 = vmatpush1.msra.mxu0 0.0
        %604 = vmatprep.subr.mxu0 0.0
        %605 = vmatpush1.msra.mxu0 0.0
        %606 = vmatprep.subr.mxu0 0.0
        %607 = vmatpush1.msra.mxu0 0.0
        %608 = vmatprep.subr.mxu0 0.0
        %609 = vmatpush1.msra.mxu0 0.0
        %610 = vmatprep.subr.mxu0 0.0
        %611 = vmatpush1.msra.mxu0 0.0
        %612 = vmatprep.subr.mxu0 0.0
        %613 = vmatpush1.msra.mxu0 0.0
        %614 = vmatprep.subr.mxu0 0.0
        %615 = vmatpush1.msra.mxu0 0.0
        %616 = vmatprep.subr.mxu0 0.0
        %617 = vmatpush1.msra.mxu0 0.0
        %618 = vmatprep.subr.mxu0 0.0
        %619 = vmatpush1.msra.mxu0 0.0
        %620 = vmatprep.subr.mxu0 0.0
        %621 = vmatpush1.msra.mxu0 0.0
        %622 = vmatprep.subr.mxu0 0.0
        %623 = vmatpush1.msra.mxu0 0.0
        %624 = vmatprep.subr.mxu0 0.0
        %625 = vmatpush1.msra.mxu0 0.0
        %626 = vmatprep.subr.mxu0 0.0
        %627 = vmatpush1.msra.mxu0 0.0
        %628 = vmatprep.subr.mxu0 0.0
        %629 = vmatpush1.msra.mxu0 0.0
        %630 = vmatprep.subr.mxu0 0.0
        %631 = vmatpush1.msra.mxu0 0.0
        %632 = vmatprep.subr.mxu0 0.0
        %633 = vmatpush1.msra.mxu0 0.0
        %634 = vmatprep.subr.mxu0 0.0
        %635 = vmatpush1.msra.mxu0 0.0
        %636 = vmatprep.subr.mxu0 0.0
        %637 = vmatpush1.msra.mxu0 0.0
        %638 = vmatprep.mubr.f32.mxu0 0.0
        %639 = vmatmul.mubr.f32.gmra.mrb[0].mxu0 %v572
        %v640 = vpop.f32.mrb[0].mxu0
        %v641 = vadd.f32 0.0, %v640
        %v642 = vpop.f32.mrb[0].mxu0
        %643 = vdwg.mxu0
        %v645 = vsel %vm570, %v569, 0
        %647 = vmatprep.subr.mxu0 0.0
        %648 = vmatpush1.msra.mxu0 %v553
        %649 = vmatprep.subr.mxu0 0.0
        %650 = vmatpush1.msra.mxu0 0.0
        %651 = vmatprep.subr.mxu0 0.0
        %652 = vmatpush1.msra.mxu0 0.0
        %653 = vmatprep.subr.mxu0 0.0
        %654 = vmatpush1.msra.mxu0 0.0
        %655 = vmatprep.subr.mxu0 0.0
        %656 = vmatpush1.msra.mxu0 0.0
        %657 = vmatprep.subr.mxu0 0.0
        %658 = vmatpush1.msra.mxu0 0.0
        %659 = vmatprep.subr.mxu0 0.0
        %660 = vmatpush1.msra.mxu0 0.0
        %661 = vmatprep.subr.mxu0 0.0
        %662 = vmatpush1.msra.mxu0 0.0
        %663 = vmatprep.subr.mxu0 0.0
        %664 = vmatpush1.msra.mxu0 0.0
        %665 = vmatprep.subr.mxu0 0.0
        %666 = vmatpush1.msra.mxu0 0.0
        %667 = vmatprep.subr.mxu0 0.0
        %668 = vmatpush1.msra.mxu0 0.0
        %669 = vmatprep.subr.mxu0 0.0
        %670 = vmatpush1.msra.mxu0 0.0
        %671 = vmatprep.subr.mxu0 0.0
        %672 = vmatpush1.msra.mxu0 0.0
        %673 = vmatprep.subr.mxu0 0.0
        %674 = vmatpush1.msra.mxu0 0.0
        %675 = vmatprep.subr.mxu0 0.0
        %676 = vmatpush1.msra.mxu0 0.0
        %677 = vmatprep.subr.mxu0 0.0
        %678 = vmatpush1.msra.mxu0 0.0
        %679 = vmatprep.subr.mxu0 0.0
        %680 = vmatpush1.msra.mxu0 0.0
        %681 = vmatprep.subr.mxu0 0.0
        %682 = vmatpush1.msra.mxu0 0.0
        %683 = vmatprep.subr.mxu0 0.0
        %684 = vmatpush1.msra.mxu0 0.0
        %685 = vmatprep.subr.mxu0 0.0
        %686 = vmatpush1.msra.mxu0 0.0
        %687 = vmatprep.subr.mxu0 0.0
        %688 = vmatpush1.msra.mxu0 0.0
        %689 = vmatprep.subr.mxu0 0.0
        %690 = vmatpush1.msra.mxu0 0.0
        %691 = vmatprep.subr.mxu0 0.0
        %692 = vmatpush1.msra.mxu0 0.0
        %693 = vmatprep.subr.mxu0 0.0
        %694 = vmatpush1.msra.mxu0 0.0
        %695 = vmatprep.subr.mxu0 0.0
        %696 = vmatpush1.msra.mxu0 0.0
        %697 = vmatprep.subr.mxu0 0.0
        %698 = vmatpush1.msra.mxu0 0.0
        %699 = vmatprep.subr.mxu0 0.0
        %700 = vmatpush1.msra.mxu0 0.0
        %701 = vmatprep.subr.mxu0 0.0
        %702 = vmatpush1.msra.mxu0 0.0
        %703 = vmatprep.subr.mxu0 0.0
        %704 = vmatpush1.msra.mxu0 0.0
        %705 = vmatprep.subr.mxu0 0.0
        %706 = vmatpush1.msra.mxu0 0.0
        %707 = vmatprep.subr.mxu0 0.0
        %708 = vmatpush1.msra.mxu0 0.0
        %709 = vmatprep.subr.mxu0 0.0
        %710 = vmatpush1.msra.mxu0 0.0
        %711 = vmatprep.mubr.f32.mxu0 0.0
        %712 = vmatmul.mubr.f32.gmra.mrb[0].mxu0 %v645
        %v713 = vpop.f32.mrb[0].mxu0
        %v714 = vadd.f32 0.0, %v713
        %v715 = vpop.f32.mrb[0].mxu0
        %716 = vdwg.mxu0
        %718 = vrot.lane.b32.xlu0 %v714, 16
        %v719 = vpop.permute.xlu0 %718
        %vm721 = vcmask 130048
        %v722 = vsel %vm721, %v641, %v719
        %v723 = vld [vmem:[%s450] sm:$0xff]
        %v724 = vld [vmem:[%s450 + $0x8] sm:$0xff]
        %v725 = vld [vmem:[%s450 + $0x10] sm:$0xff]
        %v726 = vld [vmem:[%s450 + $0x18] sm:$0xff]
        %v727 = vld [vmem:[%s531] sm:$0x1]
        %v729 = vlaneseq
        %v730 = vshrl.u32 %v729, 7
        %v731 = vsub.s32 0, %v730
        %v732 = vrot.slane %v727, %v731
        %vm734 = vcmask 261120
        %v736 = vsel %vm734, %v722, 0
        %738 = vmatprep.subr.mxu0 0.0
        %739 = vmatpush1.msra.mxu0 %v723
        %740 = vmatprep.subr.mxu0 0.0
        %741 = vmatpush1.msra.mxu0 %v724
        %742 = vmatprep.subr.mxu0 0.0
        %743 = vmatpush1.msra.mxu0 %v725
        %744 = vmatprep.subr.mxu0 0.0
        %745 = vmatpush1.msra.mxu0 %v726
        %746 = vmatprep.subr.mxu0 0.0
        %747 = vmatpush1.msra.mxu0 0.0
        %748 = vmatprep.subr.mxu0 0.0
        %749 = vmatpush1.msra.mxu0 0.0
        %750 = vmatprep.subr.mxu0 0.0
        %751 = vmatpush1.msra.mxu0 0.0
        %752 = vmatprep.subr.mxu0 0.0
        %753 = vmatpush1.msra.mxu0 0.0
        %754 = vmatprep.subr.mxu0 0.0
        %755 = vmatpush1.msra.mxu0 0.0
        %756 = vmatprep.subr.mxu0 0.0
        %757 = vmatpush1.msra.mxu0 0.0
        %758 = vmatprep.subr.mxu0 0.0
        %759 = vmatpush1.msra.mxu0 0.0
        %760 = vmatprep.subr.mxu0 0.0
        %761 = vmatpush1.msra.mxu0 0.0
        %762 = vmatprep.subr.mxu0 0.0
        %763 = vmatpush1.msra.mxu0 0.0
        %764 = vmatprep.subr.mxu0 0.0
        %765 = vmatpush1.msra.mxu0 0.0
        %766 = vmatprep.subr.mxu0 0.0
        %767 = vmatpush1.msra.mxu0 0.0
        %768 = vmatprep.subr.mxu0 0.0
        %769 = vmatpush1.msra.mxu0 0.0
        %770 = vmatprep.subr.mxu0 0.0
        %771 = vmatpush1.msra.mxu0 0.0
        %772 = vmatprep.subr.mxu0 0.0
        %773 = vmatpush1.msra.mxu0 0.0
        %774 = vmatprep.subr.mxu0 0.0
        %775 = vmatpush1.msra.mxu0 0.0
        %776 = vmatprep.subr.mxu0 0.0
        %777 = vmatpush1.msra.mxu0 0.0
        %778 = vmatprep.subr.mxu0 0.0
        %779 = vmatpush1.msra.mxu0 0.0
        %780 = vmatprep.subr.mxu0 0.0
        %781 = vmatpush1.msra.mxu0 0.0
        %782 = vmatprep.subr.mxu0 0.0
        %783 = vmatpush1.msra.mxu0 0.0
        %784 = vmatprep.subr.mxu0 0.0
        %785 = vmatpush1.msra.mxu0 0.0
        %786 = vmatprep.subr.mxu0 0.0
        %787 = vmatpush1.msra.mxu0 0.0
        %788 = vmatprep.subr.mxu0 0.0
        %789 = vmatpush1.msra.mxu0 0.0
        %790 = vmatprep.subr.mxu0 0.0
        %791 = vmatpush1.msra.mxu0 0.0
        %792 = vmatprep.subr.mxu0 0.0
        %793 = vmatpush1.msra.mxu0 0.0
        %794 = vmatprep.subr.mxu0 0.0
        %795 = vmatpush1.msra.mxu0 0.0
        %796 = vmatprep.subr.mxu0 0.0
        %797 = vmatpush1.msra.mxu0 0.0
        %798 = vmatprep.subr.mxu0 0.0
        %799 = vmatpush1.msra.mxu0 0.0
        %800 = vmatprep.subr.mxu0 0.0
        %801 = vmatpush1.msra.mxu0 0.0
        %802 = vmatprep.mubr.f32.mxu0 0.0
        %803 = vmatmul.mubr.f32.gmra.mrb[0].mxu0 %v736
        %v804 = vpop.f32.mrb[0].mxu0
        %v805 = vadd.f32 %v732, %v804
        %v806 = vpop.f32.mrb[0].mxu0
        %807 = vdwg.mxu0
        %809 = vrot.lane.b32.xlu0 %v641, 16
        %v810 = vpop.permute.xlu0 %809
        %v812 = vsel %vm721, %v714, %v810
        %v813 = vld [vmem:[%s459] sm:$0xff]
        %v814 = vld [vmem:[%s459 + $0x8] sm:$0xff]
        %v815 = vld [vmem:[%s459 + $0x10] sm:$0xff]
        %v816 = vld [vmem:[%s459 + $0x18] sm:$0xff]
        %v817 = vld [vmem:[%s534] sm:$0x1]
        %v819 = vlaneseq
        %v820 = vshrl.u32 %v819, 7
        %v821 = vsub.s32 0, %v820
        %v822 = vrot.slane %v817, %v821
        %v825 = vsel %vm734, %v812, 0
        %827 = vmatprep.subr.mxu0 0.0
        %828 = vmatpush1.msra.mxu0 %v813
        %829 = vmatprep.subr.mxu0 0.0
        %830 = vmatpush1.msra.mxu0 %v814
        %831 = vmatprep.subr.mxu0 0.0
        %832 = vmatpush1.msra.mxu0 %v815
        %833 = vmatprep.subr.mxu0 0.0
        %834 = vmatpush1.msra.mxu0 %v816
        %835 = vmatprep.subr.mxu0 0.0
        %836 = vmatpush1.msra.mxu0 0.0
        %837 = vmatprep.subr.mxu0 0.0
        %838 = vmatpush1.msra.mxu0 0.0
        %839 = vmatprep.subr.mxu0 0.0
        %840 = vmatpush1.msra.mxu0 0.0
        %841 = vmatprep.subr.mxu0 0.0
        %842 = vmatpush1.msra.mxu0 0.0
        %843 = vmatprep.subr.mxu0 0.0
        %844 = vmatpush1.msra.mxu0 0.0
        %845 = vmatprep.subr.mxu0 0.0
        %846 = vmatpush1.msra.mxu0 0.0
        %847 = vmatprep.subr.mxu0 0.0
        %848 = vmatpush1.msra.mxu0 0.0
        %849 = vmatprep.subr.mxu0 0.0
        %850 = vmatpush1.msra.mxu0 0.0
        %851 = vmatprep.subr.mxu0 0.0
        %852 = vmatpush1.msra.mxu0 0.0
        %853 = vmatprep.subr.mxu0 0.0
        %854 = vmatpush1.msra.mxu0 0.0
        %855 = vmatprep.subr.mxu0 0.0
        %856 = vmatpush1.msra.mxu0 0.0
        %857 = vmatprep.subr.mxu0 0.0
        %858 = vmatpush1.msra.mxu0 0.0
        %859 = vmatprep.subr.mxu0 0.0
        %860 = vmatpush1.msra.mxu0 0.0
        %861 = vmatprep.subr.mxu0 0.0
        %862 = vmatpush1.msra.mxu0 0.0
        %863 = vmatprep.subr.mxu0 0.0
        %864 = vmatpush1.msra.mxu0 0.0
        %865 = vmatprep.subr.mxu0 0.0
        %866 = vmatpush1.msra.mxu0 0.0
        %867 = vmatprep.subr.mxu0 0.0
        %868 = vmatpush1.msra.mxu0 0.0
        %869 = vmatprep.subr.mxu0 0.0
        %870 = vmatpush1.msra.mxu0 0.0
        %871 = vmatprep.subr.mxu0 0.0
        %872 = vmatpush1.msra.mxu0 0.0
        %873 = vmatprep.subr.mxu0 0.0
        %874 = vmatpush1.msra.mxu0 0.0
        %875 = vmatprep.subr.mxu0 0.0
        %876 = vmatpush1.msra.mxu0 0.0
        %877 = vmatprep.subr.mxu0 0.0
        %878 = vmatpush1.msra.mxu0 0.0
        %879 = vmatprep.subr.mxu0 0.0
        %880 = vmatpush1.msra.mxu0 0.0
        %881 = vmatprep.subr.mxu0 0.0
        %882 = vmatpush1.msra.mxu0 0.0
        %883 = vmatprep.subr.mxu0 0.0
        %884 = vmatpush1.msra.mxu0 0.0
        %885 = vmatprep.subr.mxu0 0.0
        %886 = vmatpush1.msra.mxu0 0.0
        %887 = vmatprep.subr.mxu0 0.0
        %888 = vmatpush1.msra.mxu0 0.0
        %889 = vmatprep.subr.mxu0 0.0
        %890 = vmatpush1.msra.mxu0 0.0
        %891 = vmatprep.mubr.f32.mxu0 0.0
        %892 = vmatmul.mubr.f32.gmra.mrb[0].mxu0 %v825
        %v893 = vpop.f32.mrb[0].mxu0
        %v894 = vadd.f32 %v822, %v893
        %v895 = vpop.f32.mrb[0].mxu0
        %896 = vdwg.mxu0
        %897 = vxpose.xlu0.b32.start [1/16] %v562, 128
        %898 = vxpose.xlu0.b32.cont [2/16] 0.0, 128
        %899 = vxpose.xlu0.b32.cont [3/16] 0.0, 128
        %900 = vxpose.xlu0.b32.cont [4/16] 0.0, 128
        %901 = vxpose.xlu0.b32.cont [5/16] 0.0, 128
        %902 = vxpose.xlu0.b32.cont [6/16] 0.0, 128
        %903 = vxpose.xlu0.b32.cont [7/16] 0.0, 128
        %904 = vxpose.xlu0.b32.cont [8/16] 0.0, 128
        %905 = vxpose.xlu0.b32.cont [9/16] 0.0, 128
        %906 = vxpose.xlu0.b32.cont [10/16] 0.0, 128
        %907 = vxpose.xlu0.b32.cont [11/16] 0.0, 128
        %908 = vxpose.xlu0.b32.cont [12/16] 0.0, 128
        %909 = vxpose.xlu0.b32.cont [13/16] 0.0, 128
        %910 = vxpose.xlu0.b32.cont [14/16] 0.0, 128
        %911 = vxpose.xlu0.b32.cont [15/16] 0.0, 128
        %912 = vxpose.xlu0.b32.end [16/16] 0.0, 128
        %v913 = vpop.trf.xlu0
        %v914 = vpop.trf.xlu0
        %v915 = vpop.trf.xlu0
        %v916 = vpop.trf.xlu0
        %v917 = vpop.trf.xlu0
        %v918 = vpop.trf.xlu0
        %v919 = vpop.trf.xlu0
        %v920 = vpop.trf.xlu0
        %v921 = vpop.trf.xlu0
        %v922 = vpop.trf.xlu0
        %v923 = vpop.trf.xlu0
        %v924 = vpop.trf.xlu0
        %v925 = vpop.trf.xlu0
        %v926 = vpop.trf.xlu0
        %v927 = vpop.trf.xlu0
        %v928 = vpop.trf.xlu0
        %vm929 = vcmask 48128
        %v931 = vsel %vm929, %v913, 0
        %vm933 = vcmask 1045504
        %v935 = vsel %vm933, %v894, 0
        %937 = vmatprep.subr.mxu0 0.0
        %938 = vmatpush1.msra.mxu0 %v935
        %939 = vmatprep.subr.mxu0 0.0
        %940 = vmatpush1.msra.mxu0 0.0
        %941 = vmatprep.subr.mxu0 0.0
        %942 = vmatpush1.msra.mxu0 0.0
        %943 = vmatprep.subr.mxu0 0.0
        %944 = vmatpush1.msra.mxu0 0.0
        %945 = vmatprep.subr.mxu0 0.0
        %946 = vmatpush1.msra.mxu0 0.0
        %947 = vmatprep.subr.mxu0 0.0
        %948 = vmatpush1.msra.mxu0 0.0
        %949 = vmatprep.subr.mxu0 0.0
        %950 = vmatpush1.msra.mxu0 0.0
        %951 = vmatprep.subr.mxu0 0.0
        %952 = vmatpush1.msra.mxu0 0.0
        %953 = vmatprep.subr.mxu0 0.0
        %954 = vmatpush1.msra.mxu0 0.0
        %955 = vmatprep.subr.mxu0 0.0
        %956 = vmatpush1.msra.mxu0 0.0
        %957 = vmatprep.subr.mxu0 0.0
        %958 = vmatpush1.msra.mxu0 0.0
        %959 = vmatprep.subr.mxu0 0.0
        %960 = vmatpush1.msra.mxu0 0.0
        %961 = vmatprep.subr.mxu0 0.0
        %962 = vmatpush1.msra.mxu0 0.0
        %963 = vmatprep.subr.mxu0 0.0
        %964 = vmatpush1.msra.mxu0 0.0
        %965 = vmatprep.subr.mxu0 0.0
        %966 = vmatpush1.msra.mxu0 0.0
        %967 = vmatprep.subr.mxu0 0.0
        %968 = vmatpush1.msra.mxu0 0.0
        %969 = vmatprep.subr.mxu0 0.0
        %970 = vmatpush1.msra.mxu0 0.0
        %971 = vmatprep.subr.mxu0 0.0
        %972 = vmatpush1.msra.mxu0 0.0
        %973 = vmatprep.subr.mxu0 0.0
        %974 = vmatpush1.msra.mxu0 0.0
        %975 = vmatprep.subr.mxu0 0.0
        %976 = vmatpush1.msra.mxu0 0.0
        %977 = vmatprep.subr.mxu0 0.0
        %978 = vmatpush1.msra.mxu0 0.0
        %979 = vmatprep.subr.mxu0 0.0
        %980 = vmatpush1.msra.mxu0 0.0
        %981 = vmatprep.subr.mxu0 0.0
        %982 = vmatpush1.msra.mxu0 0.0
        %983 = vmatprep.subr.mxu0 0.0
        %984 = vmatpush1.msra.mxu0 0.0
        %985 = vmatprep.subr.mxu0 0.0
        %986 = vmatpush1.msra.mxu0 0.0
        %987 = vmatprep.subr.mxu0 0.0
        %988 = vmatpush1.msra.mxu0 0.0
        %989 = vmatprep.subr.mxu0 0.0
        %990 = vmatpush1.msra.mxu0 0.0
        %991 = vmatprep.subr.mxu0 0.0
        %992 = vmatpush1.msra.mxu0 0.0
        %993 = vmatprep.subr.mxu0 0.0
        %994 = vmatpush1.msra.mxu0 0.0
        %995 = vmatprep.subr.mxu0 0.0
        %996 = vmatpush1.msra.mxu0 0.0
        %997 = vmatprep.subr.mxu0 0.0
        %998 = vmatpush1.msra.mxu0 0.0
        %999 = vmatprep.subr.mxu0 0.0
        %1000 = vmatpush1.msra.mxu0 0.0
        %1001 = vmatprep.mubr.f32.mxu0 0.0
        %1002 = vmatmul.mubr.f32.gmra.mrb[0].mxu0 %v931
        %v1003 = vpop.f32.mrb[0].mxu0
        %v1004 = vadd.f32 0.0, %v1003
        %v1005 = vpop.f32.mrb[0].mxu0
        %1006 = vdwg.mxu0
        %1007 = vxpose.xlu0.b32.start [1/16] %v569, 128
        %1008 = vxpose.xlu0.b32.cont [2/16] 0.0, 128
        %1009 = vxpose.xlu0.b32.cont [3/16] 0.0, 128
        %1010 = vxpose.xlu0.b32.cont [4/16] 0.0, 128
        %1011 = vxpose.xlu0.b32.cont [5/16] 0.0, 128
        %1012 = vxpose.xlu0.b32.cont [6/16] 0.0, 128
        %1013 = vxpose.xlu0.b32.cont [7/16] 0.0, 128
        %1014 = vxpose.xlu0.b32.cont [8/16] 0.0, 128
        %1015 = vxpose.xlu0.b32.cont [9/16] 0.0, 128
        %1016 = vxpose.xlu0.b32.cont [10/16] 0.0, 128
        %1017 = vxpose.xlu0.b32.cont [11/16] 0.0, 128
        %1018 = vxpose.xlu0.b32.cont [12/16] 0.0, 128
        %1019 = vxpose.xlu0.b32.cont [13/16] 0.0, 128
        %1020 = vxpose.xlu0.b32.cont [14/16] 0.0, 128
        %1021 = vxpose.xlu0.b32.cont [15/16] 0.0, 128
        %1022 = vxpose.xlu0.b32.end [16/16] 0.0, 128
        %v1023 = vpop.trf.xlu0
        %v1024 = vpop.trf.xlu0
        %v1025 = vpop.trf.xlu0
        %v1026 = vpop.trf.xlu0
        %v1027 = vpop.trf.xlu0
        %v1028 = vpop.trf.xlu0
        %v1029 = vpop.trf.xlu0
        %v1030 = vpop.trf.xlu0
        %v1031 = vpop.trf.xlu0
        %v1032 = vpop.trf.xlu0
        %v1033 = vpop.trf.xlu0
        %v1034 = vpop.trf.xlu0
        %v1035 = vpop.trf.xlu0
        %v1036 = vpop.trf.xlu0
        %v1037 = vpop.trf.xlu0
        %v1038 = vpop.trf.xlu0
        %v1040 = vsel %vm929, %v1023, 0
        %v1043 = vsel %vm933, %v805, 0
        %1045 = vmatprep.subr.mxu0 0.0
        %1046 = vmatpush1.msra.mxu0 %v1043
        %1047 = vmatprep.subr.mxu0 0.0
        %1048 = vmatpush1.msra.mxu0 0.0
        %1049 = vmatprep.subr.mxu0 0.0
        %1050 = vmatpush1.msra.mxu0 0.0
        %1051 = vmatprep.subr.mxu0 0.0
        %1052 = vmatpush1.msra.mxu0 0.0
        %1053 = vmatprep.subr.mxu0 0.0
        %1054 = vmatpush1.msra.mxu0 0.0
        %1055 = vmatprep.subr.mxu0 0.0
        %1056 = vmatpush1.msra.mxu0 0.0
        %1057 = vmatprep.subr.mxu0 0.0
        %1058 = vmatpush1.msra.mxu0 0.0
        %1059 = vmatprep.subr.mxu0 0.0
        %1060 = vmatpush1.msra.mxu0 0.0
        %1061 = vmatprep.subr.mxu0 0.0
        %1062 = vmatpush1.msra.mxu0 0.0
        %1063 = vmatprep.subr.mxu0 0.0
        %1064 = vmatpush1.msra.mxu0 0.0
        %1065 = vmatprep.subr.mxu0 0.0
        %1066 = vmatpush1.msra.mxu0 0.0
        %1067 = vmatprep.subr.mxu0 0.0
        %1068 = vmatpush1.msra.mxu0 0.0
        %1069 = vmatprep.subr.mxu0 0.0
        %1070 = vmatpush1.msra.mxu0 0.0
        %1071 = vmatprep.subr.mxu0 0.0
        %1072 = vmatpush1.msra.mxu0 0.0
        %1073 = vmatprep.subr.mxu0 0.0
        %1074 = vmatpush1.msra.mxu0 0.0
        %1075 = vmatprep.subr.mxu0 0.0
        %1076 = vmatpush1.msra.mxu0 0.0
        %1077 = vmatprep.subr.mxu0 0.0
        %1078 = vmatpush1.msra.mxu0 0.0
        %1079 = vmatprep.subr.mxu0 0.0
        %1080 = vmatpush1.msra.mxu0 0.0
        %1081 = vmatprep.subr.mxu0 0.0
        %1082 = vmatpush1.msra.mxu0 0.0
        %1083 = vmatprep.subr.mxu0 0.0
        %1084 = vmatpush1.msra.mxu0 0.0
        %1085 = vmatprep.subr.mxu0 0.0
        %1086 = vmatpush1.msra.mxu0 0.0
        %1087 = vmatprep.subr.mxu0 0.0
        %1088 = vmatpush1.msra.mxu0 0.0
        %1089 = vmatprep.subr.mxu0 0.0
        %1090 = vmatpush1.msra.mxu0 0.0
        %1091 = vmatprep.subr.mxu0 0.0
        %1092 = vmatpush1.msra.mxu0 0.0
        %1093 = vmatprep.subr.mxu0 0.0
        %1094 = vmatpush1.msra.mxu0 0.0
        %1095 = vmatprep.subr.mxu0 0.0
        %1096 = vmatpush1.msra.mxu0 0.0
        %1097 = vmatprep.subr.mxu0 0.0
        %1098 = vmatpush1.msra.mxu0 0.0
        %1099 = vmatprep.subr.mxu0 0.0
        %1100 = vmatpush1.msra.mxu0 0.0
        %1101 = vmatprep.subr.mxu0 0.0
        %1102 = vmatpush1.msra.mxu0 0.0
        %1103 = vmatprep.subr.mxu0 0.0
        %1104 = vmatpush1.msra.mxu0 0.0
        %1105 = vmatprep.subr.mxu0 0.0
        %1106 = vmatpush1.msra.mxu0 0.0
        %1107 = vmatprep.subr.mxu0 0.0
        %1108 = vmatpush1.msra.mxu0 0.0
        %1109 = vmatprep.mubr.f32.mxu0 0.0
        %1110 = vmatmul.mubr.f32.gmra.mrb[0].mxu0 %v1040
        %v1111 = vpop.f32.mrb[0].mxu0
        %v1112 = vadd.f32 %v1004, %v1111
        %v1113 = vpop.f32.mrb[0].mxu0
        %1114 = vdwg.mxu0
        %v1115 = vld [vmem:[%s468] sm:$0xff]
        %v1116 = vld [vmem:[%s468 + $0x8] sm:$0xff]
        %v1117 = vld [vmem:[%s468 + $0x10] sm:$0xff]
        %v1118 = vld [vmem:[%s468 + $0x18] sm:$0xff]
        %v1119 = vld [vmem:[%s537] sm:$0x1]
        %v1121 = vlaneseq
        %v1122 = vshrl.u32 %v1121, 7
        %v1123 = vsub.s32 0, %v1122
        %v1124 = vrot.slane %v1119, %v1123
        %v1127 = vsel %vm734, %v1112, 0
        %1129 = vmatprep.subr.mxu0 0.0
        %1130 = vmatpush1.msra.mxu0 %v1115
        %1131 = vmatprep.subr.mxu0 0.0
        %1132 = vmatpush1.msra.mxu0 %v1116
        %1133 = vmatprep.subr.mxu0 0.0
        %1134 = vmatpush1.msra.mxu0 %v1117
        %1135 = vmatprep.subr.mxu0 0.0
        %1136 = vmatpush1.msra.mxu0 %v1118
        %1137 = vmatprep.subr.mxu0 0.0
        %1138 = vmatpush1.msra.mxu0 0.0
        %1139 = vmatprep.subr.mxu0 0.0
        %1140 = vmatpush1.msra.mxu0 0.0
        %1141 = vmatprep.subr.mxu0 0.0
        %1142 = vmatpush1.msra.mxu0 0.0
        %1143 = vmatprep.subr.mxu0 0.0
        %1144 = vmatpush1.msra.mxu0 0.0
        %1145 = vmatprep.subr.mxu0 0.0
        %1146 = vmatpush1.msra.mxu0 0.0
        %1147 = vmatprep.subr.mxu0 0.0
        %1148 = vmatpush1.msra.mxu0 0.0
        %1149 = vmatprep.subr.mxu0 0.0
        %1150 = vmatpush1.msra.mxu0 0.0
        %1151 = vmatprep.subr.mxu0 0.0
        %1152 = vmatpush1.msra.mxu0 0.0
        %1153 = vmatprep.subr.mxu0 0.0
        %1154 = vmatpush1.msra.mxu0 0.0
        %1155 = vmatprep.subr.mxu0 0.0
        %1156 = vmatpush1.msra.mxu0 0.0
        %1157 = vmatprep.subr.mxu0 0.0
        %1158 = vmatpush1.msra.mxu0 0.0
        %1159 = vmatprep.subr.mxu0 0.0
        %1160 = vmatpush1.msra.mxu0 0.0
        %1161 = vmatprep.subr.mxu0 0.0
        %1162 = vmatpush1.msra.mxu0 0.0
        %1163 = vmatprep.subr.mxu0 0.0
        %1164 = vmatpush1.msra.mxu0 0.0
        %1165 = vmatprep.subr.mxu0 0.0
        %1166 = vmatpush1.msra.mxu0 0.0
        %1167 = vmatprep.subr.mxu0 0.0
        %1168 = vmatpush1.msra.mxu0 0.0
        %1169 = vmatprep.subr.mxu0 0.0
        %1170 = vmatpush1.msra.mxu0 0.0
        %1171 = vmatprep.subr.mxu0 0.0
        %1172 = vmatpush1.msra.mxu0 0.0
        %1173 = vmatprep.subr.mxu0 0.0
        %1174 = vmatpush1.msra.mxu0 0.0
        %1175 = vmatprep.subr.mxu0 0.0
        %1176 = vmatpush1.msra.mxu0 0.0
        %1177 = vmatprep.subr.mxu0 0.0
        %1178 = vmatpush1.msra.mxu0 0.0
        %1179 = vmatprep.subr.mxu0 0.0
        %1180 = vmatpush1.msra.mxu0 0.0
        %1181 = vmatprep.subr.mxu0 0.0
        %1182 = vmatpush1.msra.mxu0 0.0
        %1183 = vmatprep.subr.mxu0 0.0
        %1184 = vmatpush1.msra.mxu0 0.0
        %1185 = vmatprep.subr.mxu0 0.0
        %1186 = vmatpush1.msra.mxu0 0.0
        %1187 = vmatprep.subr.mxu0 0.0
        %1188 = vmatpush1.msra.mxu0 0.0
        %1189 = vmatprep.subr.mxu0 0.0
        %1190 = vmatpush1.msra.mxu0 0.0
        %1191 = vmatprep.subr.mxu0 0.0
        %1192 = vmatpush1.msra.mxu0 0.0
        %1193 = vmatprep.mubr.f32.mxu0 0.0
        %1194 = vmatmul.mubr.f32.gmra.mrb[0].mxu0 %v1127
        %v1195 = vpop.f32.mrb[0].mxu0
        %v1196 = vadd.f32 %v1124, %v1195
        %v1197 = vpop.f32.mrb[0].mxu0
        %1198 = vdwg.mxu0
        %v1199 = vld [vmem:[%s542] sm:$0xff]
        %v1200 = vld [vmem:[%s542 + $0x8] sm:$0xff]
        %v1201 = vld [vmem:[%s545] sm:$0x1]
        %v1203 = vlaneseq
        %v1204 = vshrl.u32 %v1203, 7
        %v1205 = vsub.s32 0, %v1204
        %v1206 = vrot.slane %v1201, %v1205
        %v1209 = vsel %vm721, %v553, 0
        %1211 = vmatprep.subr.mxu0 0.0
        %1212 = vmatpush1.msra.mxu0 %v1199
        %1213 = vmatprep.subr.mxu0 0.0
        %1214 = vmatpush1.msra.mxu0 %v1200
        %1215 = vmatprep.subr.mxu0 0.0
        %1216 = vmatpush1.msra.mxu0 0.0
        %1217 = vmatprep.subr.mxu0 0.0
        %1218 = vmatpush1.msra.mxu0 0.0
        %1219 = vmatprep.subr.mxu0 0.0
        %1220 = vmatpush1.msra.mxu0 0.0
        %1221 = vmatprep.subr.mxu0 0.0
        %1222 = vmatpush1.msra.mxu0 0.0
        %1223 = vmatprep.subr.mxu0 0.0
        %1224 = vmatpush1.msra.mxu0 0.0
        %1225 = vmatprep.subr.mxu0 0.0
        %1226 = vmatpush1.msra.mxu0 0.0
        %1227 = vmatprep.subr.mxu0 0.0
        %1228 = vmatpush1.msra.mxu0 0.0
        %1229 = vmatprep.subr.mxu0 0.0
        %1230 = vmatpush1.msra.mxu0 0.0
        %1231 = vmatprep.subr.mxu0 0.0
        %1232 = vmatpush1.msra.mxu0 0.0
        %1233 = vmatprep.subr.mxu0 0.0
        %1234 = vmatpush1.msra.mxu0 0.0
        %1235 = vmatprep.subr.mxu0 0.0
        %1236 = vmatpush1.msra.mxu0 0.0
        %1237 = vmatprep.subr.mxu0 0.0
        %1238 = vmatpush1.msra.mxu0 0.0
        %1239 = vmatprep.subr.mxu0 0.0
        %1240 = vmatpush1.msra.mxu0 0.0
        %1241 = vmatprep.subr.mxu0 0.0
        %1242 = vmatpush1.msra.mxu0 0.0
        %1243 = vmatprep.subr.mxu0 0.0
        %1244 = vmatpush1.msra.mxu0 0.0
        %1245 = vmatprep.subr.mxu0 0.0
        %1246 = vmatpush1.msra.mxu0 0.0
        %1247 = vmatprep.subr.mxu0 0.0
        %1248 = vmatpush1.msra.mxu0 0.0
        %1249 = vmatprep.subr.mxu0 0.0
        %1250 = vmatpush1.msra.mxu0 0.0
        %1251 = vmatprep.subr.mxu0 0.0
        %1252 = vmatpush1.msra.mxu0 0.0
        %1253 = vmatprep.subr.mxu0 0.0
        %1254 = vmatpush1.msra.mxu0 0.0
        %1255 = vmatprep.subr.mxu0 0.0
        %1256 = vmatpush1.msra.mxu0 0.0
        %1257 = vmatprep.subr.mxu0 0.0
        %1258 = vmatpush1.msra.mxu0 0.0
        %1259 = vmatprep.subr.mxu0 0.0
        %1260 = vmatpush1.msra.mxu0 0.0
        %1261 = vmatprep.subr.mxu0 0.0
        %1262 = vmatpush1.msra.mxu0 0.0
        %1263 = vmatprep.subr.mxu0 0.0
        %1264 = vmatpush1.msra.mxu0 0.0
        %1265 = vmatprep.subr.mxu0 0.0
        %1266 = vmatpush1.msra.mxu0 0.0
        %1267 = vmatprep.subr.mxu0 0.0
        %1268 = vmatpush1.msra.mxu0 0.0
        %1269 = vmatprep.subr.mxu0 0.0
        %1270 = vmatpush1.msra.mxu0 0.0
        %1271 = vmatprep.subr.mxu0 0.0
        %1272 = vmatpush1.msra.mxu0 0.0
        %1273 = vmatprep.subr.mxu0 0.0
        %1274 = vmatpush1.msra.mxu0 0.0
        %1275 = vmatprep.mubr.f32.mxu0 0.0
        %1276 = vmatmul.mubr.f32.gmra.mrb[0].mxu0 %v1209
        %v1277 = vpop.f32.mrb[0].mxu0
        %v1278 = vadd.f32 %v1206, %v1277
        %v1279 = vpop.f32.mrb[0].mxu0
        %1280 = vdwg.mxu0
        %v1281 = vadd.f32 %v1196, %v1278
        %v1282 = vxor.u32 %v1281, 2147483648
        %v1283 = vmul.f32 %v1282, 1.442695
        %v1284 = vpow.pop %v1283
        %v1285 = vadd.f32 %v1284, 1.0
        %v1286 = vrcp.pop %v1285
        %v1287 = vmul.f32 1.0, %v1286
        %1289 = vrot.lane.b32.xlu0 %v1278, 96
        %v1290 = vpop.permute.xlu0 %1289
        %v1292 = vmul.f32 %v1287, %v1290
        %1294 = vrot.lane.b32.xlu0 %v1292, 32
        %v1295 = vpop.permute.xlu0 %1294
        %v1297 = vadd.f32 %v1196, %v1295
        %v1298 = vtanh.pop %v1297
        %v1299 = vsub.f32 1.0, %v1287
        %1301 = vrot.lane.b32.xlu0 %v1298, 112
        %v1302 = vpop.permute.xlu0 %1301
        %v1304 = vmul.f32 %v1299, %v1302
        %1305 = vrot.lane.b32.xlu0 %v553, 16
        %v1306 = vpop.permute.xlu0 %1305
        %v1308 = vmul.f32 %v1287, %v1306
        %v1309 = vadd.f32 %v1304, %v1308
        %1311 = vrot.lane.b32.xlu0 %v1309, 112
        %v1312 = vpop.permute.xlu0 %1311
        %1314 = vst.msk [vmem:[#allocation2] sm:$0xff] %vm721, %v1312
        %p1315 = scmp.eq.s32.totalorder %s29, 1
        // Predicated region
        $region81: #{tpu_custom_call.1} parent=63 // pred_check
          %p1316 = pneg %p1315
        $region82: #{tpu_custom_call.1} parent=63 // pred_check_branch
          %1318 = sbr.rel (%p1316) target = $region84
        $region83: #{tpu_custom_call.1} parent=63 // pred_region
          %1319 = vst.msk [vmem:[#allocation9] sm:$0xff] %vm721, %v1312
        $region84: #{tpu_custom_call.1} parent=63 // pred_fallthru
          _
        // Predicated region
        $region85: #{tpu_custom_call.1} parent=63 // pred_check
          %p1320 = pneg %p313
        $region86: #{tpu_custom_call.1} parent=63 // pred_check_branch
          %1322 = sbr.rel (%p1320) target = $region88
        $region87: #{tpu_custom_call.1} parent=63 // pred_region
          %s1324 = ssub.s32 128, 128
          %1325 = vsyncadd [#allocation5], %s1324
          %s1327 = sshll.u32 [#allocation9], 4
          %s1328 = int_to_ptr.vmem [resolvable:$true] %s1327
          %1330 = dma.vmem_to_hbm [thread:$0]  %s1328, 128, %s11, [#allocation5]
        $region88: #{tpu_custom_call.1} parent=63 // pred_fallthru
          _
        // Predicated region
        $region89: #{tpu_custom_call.1} parent=63 // pred_check
          %p1331 = pneg %p313
        $region90: #{tpu_custom_call.1} parent=63 // pred_check_branch
          %1333 = sbr.rel (%p1331) target = $region92
        $region91: #{tpu_custom_call.1} parent=63 // pred_region
          %1334 = dma.done [#allocation5], 128
        $region92: #{tpu_custom_call.1} parent=63 // pred_fallthru
          _
      $region64: #{tpu_custom_call.1} parent=5 // pred_fallthru
        _
      %p1335 = scmp.le.s32.totalorder 2, %s24
      // Predicated region
      $region93: #{tpu_custom_call.1} parent=5 // pred_check
        %p1336 = pneg %p1335
      $region94: #{tpu_custom_call.1} parent=5 // pred_check_branch
        %1338 = sbr.rel (%p1336) target = $region96
      $region95: #{tpu_custom_call.1} parent=5 // pred_region
        %s1339 = ssub.s32 %s24, 2
      $region96: #{tpu_custom_call.1} parent=5 // pred_fallthru
        _
    $region6: #{tpu_custom_call.1} parent=1 // loop_footer
      %s28 = sadd.s32 1, %s24
    $region7: #{tpu_custom_call.1} parent=1 // loop_footer_branch
      %23 = sbr.rel target = $region3
    $region8: #{tpu_custom_call.1} parent=1 // loop_exit
      _
    %1340 = vsyncpa [#allocation4], 1
    %s1341 = scalar_lea.sflag [#allocation4], 1
    %1342 = vsyncpa %s1341, 1
    %1343 = vsyncpa [#allocation7], 1
    %s1344 = scalar_lea.sflag [#allocation7], 1
    %1345 = vsyncpa %s1344, 1
    %1346 = vsyncpa [#allocation5], 1
    %s1347 = scalar_lea.sflag [#allocation5], 1
    %1348 = vsyncpa %s1347, 1

</llo_original>
